<compile_context>
chip_gen: v6e
topology: v6e:2x2x1
jax: 0.10.0
libtpu: 0.0.40
codegen_flags: <defaults>
</compile_context>

<pallas_src>
import functools

import jax
import jax.numpy as jnp
from jax.experimental import pallas as pl
from jax.experimental.pallas import tpu as pltpu


def _round_up(x, m):
    return ((x + m - 1) // m) * m


def _largest_divisor_leq(n, cap):
    cap = max(1, min(n, cap))
    for d in range(cap, 0, -1):
        if n % d == 0:
            return d
    return 1


def _spatial_gate_kernel(params_ref, mask_ref, x_ref, o_ref, pmax_ref, pmean_ref,
                         *, W, HW, LP, C, c_chunk, io_dtype):
    # params_ref : SMEM (100,) f32 = [bn_scale, bn_shift, w_max(49), w_mean(49)]
    # mask_ref   : VMEM (8, LP) f32 column-validity masks for dj = -3..3 (row 7 unused)
    # x_ref/o_ref: (bb, C, HW) lane-dense blocks (HW flattened into the lane dim)
    # pmax/pmean : (bb, LP) f32 zero-tailed flat pooled maps (LP >= HW + 3*W, mult of 128)
    f32 = jnp.float32
    bb = x_ref.shape[0]

    # ---- ChannelPool: max / mean over channels, chunked (bounded f32 working set) ----
    cmax = None
    csum = None
    for c0 in range(0, C, c_chunk):
        c1 = min(C, c0 + c_chunk)
        xc = x_ref[:, c0:c1, :]                                   # (bb, cc, HW), native dtype
        cm = jnp.max(xc, axis=1).astype(f32)
        cs = jnp.sum(xc.astype(f32), axis=1)                      # f32 accumulation (matches ref)
        cmax = cm if cmax is None else jnp.maximum(cmax, cm)
        csum = cs if csum is None else csum + cs
    cmean = csum * f32(1.0 / C)

    # ---- zero-tailed flat pooled maps (tail zeros give the conv its row halo) ----
    pmax_ref[:, :HW] = cmax
    pmean_ref[:, :HW] = cmean
    pmax_ref[:, HW:] = jnp.zeros((bb, LP - HW), f32)
    pmean_ref[:, HW:] = jnp.zeros((bb, LP - HW), f32)
    pmax = pmax_ref[...]
    pmean = pmean_ref[...]
    masks = mask_ref[...]                                          # (8, LP) f32

    def rot(v, s):
        s = s % LP
        return v if s == 0 else pltpu.roll(v, s, axis=1)           # XLU lane rotate

    # R[di][q] = P[(q + di*W) mod LP] : 7 lane rolls per pooled map.
    rmax = [rot(pmax, -di * W) for di in range(-3, 4)]
    rmean = [rot(pmean, -di * W) for di in range(-3, 4)]

    # 7x7 conv: per column offset dj, fuse the 14 di-taps into one vector, apply one
    # small lane roll + column mask, then accumulate (only 7 acc updates total).
    acc = None
    for dj in range(-3, 4):
        kj = dj + 3
        s_dj = None
        for di in range(-3, 4):
            ki = di + 3
            w_mx = params_ref[2 + ki * 7 + kj]                     # weight on the max map
            w_mn = params_ref[2 + 49 + ki * 7 + kj]                # weight on the mean map
            t = w_mx * rmax[di + 3] + w_mn * rmean[di + 3]
            s_dj = t if s_dj is None else s_dj + t
        s_dj = rot(s_dj, -dj)                                      # value at q: S[(q + dj) mod LP]
        if dj != 0:
            s_dj = s_dj * masks[kj:kj + 1, :]                      # kill columns with j+dj out of range
        acc = s_dj if acc is None else acc + s_dj

    # ---- folded BatchNorm (inference) + sigmoid gate ----
    gate = jax.nn.sigmoid(acc[:, :HW] * params_ref[0] + params_ref[1])   # (bb, HW) f32
    gate = gate.astype(io_dtype)

    # ---- streaming x * gate, chunked over channels (lane-dense stores) ----
    for c0 in range(0, C, c_chunk):
        c1 = min(C, c0 + c_chunk)
        xc = x_ref[:, c0:c1, :].astype(io_dtype)
        o_ref[:, c0:c1, :] = (xc * gate[:, None, :]).astype(o_ref.dtype)


def spatial_gate(x, conv_w, bn_gamma, bn_beta, bn_mean, bn_var, *, eps=1e-5):
    """SpatialGate forward (inference). x: (B, C, H, W); conv_w: (1, 2, 7, 7)."""
    B, C, H, W = x.shape
    assert conv_w.shape == (1, 2, 7, 7)
    HW = H * W
    LP = _round_up(HW + 3 * W + 3, 128)
    f32 = jnp.float32

    # Fold eval-mode BatchNorm2d(1) into a scalar scale/shift.
    # TODO(synk): training-mode BatchNorm (batch statistics + running-stat update) is a
    # cross-batch reduction and is not implemented; inference semantics only.
    scal = lambda v: jnp.asarray(v, f32).reshape(-1)[0]
    g, bta, mu, var = scal(bn_gamma), scal(bn_beta), scal(bn_mean), scal(bn_var)
    a_bn = g / jnp.sqrt(var + f32(eps))
    b_bn = bta - a_bn * mu
    params = jnp.concatenate([
        jnp.stack([a_bn, b_bn]),
        conv_w[0, 0].astype(f32).reshape(-1),
        conv_w[0, 1].astype(f32).reshape(-1),
    ])                                                             # (100,) f32 -> SMEM

    # Column-validity masks for the 7 horizontal conv offsets, precomputed once here
    # (no per-step iota/mod work); resident in VMEM across grid steps.
    col = jnp.arange(LP, dtype=jnp.int32) % jnp.int32(W)
    rows = [(((col + dj) >= 0) & ((col + dj) < W)).astype(f32) for dj in range(-3, 4)]
    rows.append(jnp.zeros((LP,), f32))                              # pad to 8 sublanes
    colmask = jnp.stack(rows, axis=0)                               # (8, LP)

    # Lane-dense streaming layout: flatten H*W into the lane dimension (free reshape).
    x_flat = x.reshape(B, C, HW)

    # ---- generation-aware sizing ----
    try:
        vmem_cap = int(getattr(pltpu.get_tpu_info(), "vmem_capacity_bytes", 64 << 20))
    except Exception:
        vmem_cap = 64 << 20
    itemsize = x.dtype.itemsize
    per_b = C * HW * itemsize                                      # one batch element

    # Batch elements per grid step: big enough to amortize the ~0.35us/step overhead,
    # small enough that double-buffered in+out blocks use only ~1/3 of VMEM, and keep
    # >= 2 grid steps when B >= 2 so both v7x TensorCores get work.
    bb_par = B if B < 2 else max(1, B // 2)
    bb_vmem = max(1, (vmem_cap // 3) // max(1, 4 * per_b))
    bb_amortize = max(1, -(-(1 << 20) // max(1, per_b)))
    bb = _largest_divisor_leq(B, min(bb_par, bb_vmem, bb_amortize))
    # TODO(synk): if B == 1 on v7x, a second parallel grid axis over channel chunks of
    # the streaming multiply would be needed to occupy both TensorCores.

    # Channel chunk for the in-kernel pooling / gating passes (bounds f32 working set).
    c_chunk = max(1, min(C, (512 << 10) // max(1, bb * HW * max(itemsize, 4))))
    if C > 8:
        c_chunk = max(8, (c_chunk // 8) * 8)                       # sublane-aligned chunks
    c_chunk = min(c_chunk, C)

    if x.dtype == jnp.dtype(jnp.bfloat16) or x.dtype == jnp.dtype(jnp.float16):
        io_dtype = x.dtype                                         # bf16 streaming math on v6e/v7x
    else:
        io_dtype = jnp.float32

    block_bytes = bb * per_b
    need = (4 * block_bytes                       # double-buffered in + out blocks
            + 2 * bb * LP * 4                     # pooled-map scratch
            + 2 * 8 * LP * 4                      # resident column masks
            + 20 * bb * LP * 4                    # rolled copies / conv temporaries
            + 6 * bb * c_chunk * HW * 4           # chunked pooling / gating working set
            + (2 << 20))
    vmem_limit = int(min(max(need, 32 << 20), int(vmem_cap * 0.9)))
    # TODO(synk): if a single batch element exceeds the block budget (very large C*H*W),
    # the streaming pass should additionally be tiled over channel chunks in the grid.

    kernel = functools.partial(
        _spatial_gate_kernel,
        W=W, HW=HW, LP=LP, C=C, c_chunk=c_chunk, io_dtype=io_dtype)

    out_flat = pl.pallas_call(
        kernel,
        out_shape=jax.ShapeDtypeStruct((B, C, HW), x.dtype),
        grid_spec=pltpu.PrefetchScalarGridSpec(
            num_scalar_prefetch=0,
            grid=(B // bb,),
            in_specs=[
                pl.BlockSpec(memory_space=pltpu.MemorySpace.SMEM),   # folded BN + conv weights
                pl.BlockSpec((8, LP), lambda i: (0, 0)),             # column masks (resident)
                pl.BlockSpec((bb, C, HW), lambda i: (i, 0, 0)),      # x (lane-dense)
            ],
            out_specs=pl.BlockSpec((bb, C, HW), lambda i: (i, 0, 0)),
            scratch_shapes=[
                pltpu.VMEM((bb, LP), jnp.float32),
                pltpu.VMEM((bb, LP), jnp.float32),
            ],
        ),
        compiler_params=pltpu.CompilerParams(
            dimension_semantics=("parallel",),
            vmem_limit_bytes=vmem_limit,
        ),
    )(params, colmask, x_flat)
    return out_flat.reshape(B, C, H, W)


def _spatial_gate_ref(x, conv_w, bn_gamma, bn_beta, bn_mean, bn_var, eps=1e-5):
    xf = x.astype(jnp.float32)
    cmax = jnp.max(xf, axis=1, keepdims=True)
    cmean = jnp.mean(xf, axis=1, keepdims=True)
    pooled = jnp.concatenate([cmax, cmean], axis=1)                 # (B, 2, H, W)
    conv = jax.lax.conv_general_dilated(
        pooled, conv_w.astype(jnp.float32),
        window_strides=(1, 1), padding=((3, 3), (3, 3)),
        dimension_numbers=("NCHW", "OIHW", "NCHW"))                 # (B, 1, H, W)
    y = bn_gamma * (conv - bn_mean) / jnp.sqrt(bn_var + eps) + bn_beta
    return (xf * jax.nn.sigmoid(y)).astype(x.dtype)


if __name__ == "__main__":
    key = jax.random.PRNGKey(0)
    kx, kw = jax.random.split(key, 2)
    x = jax.random.normal(kx, (2, 4, 16, 16), dtype=jnp.float32)
    conv_w = jax.random.normal(kw, (1, 2, 7, 7), dtype=jnp.float32) * 0.1
    bn_gamma = jnp.float32(1.2)
    bn_beta = jnp.float32(-0.05)
    bn_mean = jnp.float32(0.03)
    bn_var = jnp.float32(0.9)

    out = spatial_gate(x, conv_w, bn_gamma, bn_beta, bn_mean, bn_var)
    out = jax.block_until_ready(out)

    ref = _spatial_gate_ref(x, conv_w, bn_gamma, bn_beta, bn_mean, bn_var)
    assert out.shape == x.shape and out.dtype == x.dtype
    assert jnp.allclose(out, ref, atol=1e-5, rtol=1e-5)
    print("KERNEL_OK")
</pallas_src>

<mosaic_0001>
module attributes {stable_mosaic.version = 11 : i64} {
  func.func @_spatial_gate_kernel(%arg0: i32, %arg1: memref<100xf32, #tpu.memory_space<smem>>, %arg2: memref<8x384xf32, #tpu.memory_space<vmem>>, %arg3: memref<1x4x256xf32, #tpu.memory_space<vmem>>, %arg4: memref<1x4x256xf32, #tpu.memory_space<vmem>>, %arg5: memref<1x384xf32, #tpu.memory_space<vmem>>, %arg6: memref<1x384xf32, #tpu.memory_space<vmem>>) attributes {dimension_semantics = [#tpu.dimension_semantics<parallel>], iteration_bounds = array<i64: 2>, scalar_prefetch = 0 : i64, scratch_operands = 2 : i64, tpu.core_type = #tpu.core_type<tc>, window_params = [{transform_indices = @transform_0, window_bounds = array<i64: 100>}, {pipeline_mode = #tpu.pipeline_mode<synchronous>, transform_indices = @transform_1, window_bounds = array<i64: 8, 384>}, {transform_indices = @transform_2, window_bounds = array<i64: 1, 4, 256>}, {transform_indices = @transform_3, window_bounds = array<i64: 1, 4, 256>}]} {
    %c0 = arith.constant 0 : index
    %c0_0 = arith.constant 0 : index
    %c0_1 = arith.constant 0 : index
    %0 = vector.load %arg3[%c0, %c0_0, %c0_1] : memref<1x4x256xf32, #tpu.memory_space<vmem>>, vector<1x4x256xf32>
    %cst = arith.constant dense<0xFF800000> : vector<1x256xf32>
    %1 = vector.multi_reduction <maximumf>, %0, %cst [1] : vector<1x4x256xf32> to vector<1x256xf32>
    %cst_2 = arith.constant dense<0.000000e+00> : vector<1x256xf32>
    %2 = vector.multi_reduction <add>, %0, %cst_2 [1] : vector<1x4x256xf32> to vector<1x256xf32>
    %cst_3 = arith.constant 2.500000e-01 : f32
    %3 = vector.broadcast %cst_3 : f32 to vector<1x256xf32>
    %4 = arith.mulf %2, %3 : vector<1x256xf32>
    %c0_4 = arith.constant 0 : index
    %c0_5 = arith.constant 0 : index
    %5 = vector.load %arg5[%c0_4, %c0_5] : memref<1x384xf32, #tpu.memory_space<vmem>>, vector<1x256xf32>
    tpu.vector_store %arg5[%c0_4, %c0_5], %1 {strides = array<i32>} : memref<1x384xf32, #tpu.memory_space<vmem>>, vector<1x256xf32>,
    %c0_6 = arith.constant 0 : index
    %c0_7 = arith.constant 0 : index
    %6 = vector.load %arg6[%c0_6, %c0_7] : memref<1x384xf32, #tpu.memory_space<vmem>>, vector<1x256xf32>
    tpu.vector_store %arg6[%c0_6, %c0_7], %4 {strides = array<i32>} : memref<1x384xf32, #tpu.memory_space<vmem>>, vector<1x256xf32>,
    %cst_8 = arith.constant 0.000000e+00 : f32
    %7 = vector.broadcast %cst_8 : f32 to vector<1x128xf32>
    %c0_9 = arith.constant 0 : index
    %c256 = arith.constant 256 : index
    %8 = vector.load %arg5[%c0_9, %c256] : memref<1x384xf32, #tpu.memory_space<vmem>>, vector<1x128xf32>
    tpu.vector_store %arg5[%c0_9, %c256], %7 {strides = array<i32>} : memref<1x384xf32, #tpu.memory_space<vmem>>, vector<1x128xf32>,
    %cst_10 = arith.constant 0.000000e+00 : f32
    %9 = vector.broadcast %cst_10 : f32 to vector<1x128xf32>
    %c0_11 = arith.constant 0 : index
    %c256_12 = arith.constant 256 : index
    %10 = vector.load %arg6[%c0_11, %c256_12] : memref<1x384xf32, #tpu.memory_space<vmem>>, vector<1x128xf32>
    tpu.vector_store %arg6[%c0_11, %c256_12], %9 {strides = array<i32>} : memref<1x384xf32, #tpu.memory_space<vmem>>, vector<1x128xf32>,
    %c0_13 = arith.constant 0 : index
    %c0_14 = arith.constant 0 : index
    %11 = vector.load %arg5[%c0_13, %c0_14] : memref<1x384xf32, #tpu.memory_space<vmem>>, vector<1x384xf32>
    %c0_15 = arith.constant 0 : index
    %c0_16 = arith.constant 0 : index
    %12 = vector.load %arg6[%c0_15, %c0_16] : memref<1x384xf32, #tpu.memory_space<vmem>>, vector<1x384xf32>
    %c0_17 = arith.constant 0 : index
    %c0_18 = arith.constant 0 : index
    %13 = vector.load %arg2[%c0_17, %c0_18] : memref<8x384xf32, #tpu.memory_space<vmem>>, vector<8x384xf32>
    %c48_i32 = arith.constant 48 : i32
    %14 = tpu.dynamic_rotate %11 by %c48_i32 dim 1 : vector<1x384xf32>, i32 -> vector<1x384xf32>
    %c32_i32 = arith.constant 32 : i32
    %15 = tpu.dynamic_rotate %11 by %c32_i32 dim 1 : vector<1x384xf32>, i32 -> vector<1x384xf32>
    %c16_i32 = arith.constant 16 : i32
    %16 = tpu.dynamic_rotate %11 by %c16_i32 dim 1 : vector<1x384xf32>, i32 -> vector<1x384xf32>
    %c368_i32 = arith.constant 368 : i32
    %17 = tpu.dynamic_rotate %11 by %c368_i32 dim 1 : vector<1x384xf32>, i32 -> vector<1x384xf32>
    %c352_i32 = arith.constant 352 : i32
    %18 = tpu.dynamic_rotate %11 by %c352_i32 dim 1 : vector<1x384xf32>, i32 -> vector<1x384xf32>
    %c336_i32 = arith.constant 336 : i32
    %19 = tpu.dynamic_rotate %11 by %c336_i32 dim 1 : vector<1x384xf32>, i32 -> vector<1x384xf32>
    %c48_i32_19 = arith.constant 48 : i32
    %20 = tpu.dynamic_rotate %12 by %c48_i32_19 dim 1 : vector<1x384xf32>, i32 -> vector<1x384xf32>
    %c32_i32_20 = arith.constant 32 : i32
    %21 = tpu.dynamic_rotate %12 by %c32_i32_20 dim 1 : vector<1x384xf32>, i32 -> vector<1x384xf32>
    %c16_i32_21 = arith.constant 16 : i32
    %22 = tpu.dynamic_rotate %12 by %c16_i32_21 dim 1 : vector<1x384xf32>, i32 -> vector<1x384xf32>
    %c368_i32_22 = arith.constant 368 : i32
    %23 = tpu.dynamic_rotate %12 by %c368_i32_22 dim 1 : vector<1x384xf32>, i32 -> vector<1x384xf32>
    %c352_i32_23 = arith.constant 352 : i32
    %24 = tpu.dynamic_rotate %12 by %c352_i32_23 dim 1 : vector<1x384xf32>, i32 -> vector<1x384xf32>
    %c336_i32_24 = arith.constant 336 : i32
    %25 = tpu.dynamic_rotate %12 by %c336_i32_24 dim 1 : vector<1x384xf32>, i32 -> vector<1x384xf32>
    %c2 = arith.constant 2 : index
    %26 = memref.load %arg1[%c2] : memref<100xf32, #tpu.memory_space<smem>>
    %c51 = arith.constant 51 : index
    %27 = memref.load %arg1[%c51] : memref<100xf32, #tpu.memory_space<smem>>
    %28 = vector.broadcast %26 : f32 to vector<1x384xf32>
    %29 = arith.mulf %28, %14 : vector<1x384xf32>
    %30 = vector.broadcast %27 : f32 to vector<1x384xf32>
    %31 = arith.mulf %30, %20 : vector<1x384xf32>
    %32 = arith.addf %29, %31 : vector<1x384xf32>
    %c9 = arith.constant 9 : index
    %33 = memref.load %arg1[%c9] : memref<100xf32, #tpu.memory_space<smem>>
    %c58 = arith.constant 58 : index
    %34 = memref.load %arg1[%c58] : memref<100xf32, #tpu.memory_space<smem>>
    %35 = vector.broadcast %33 : f32 to vector<1x384xf32>
    %36 = arith.mulf %35, %15 : vector<1x384xf32>
    %37 = vector.broadcast %34 : f32 to vector<1x384xf32>
    %38 = arith.mulf %37, %21 : vector<1x384xf32>
    %39 = arith.addf %36, %38 : vector<1x384xf32>
    %40 = arith.addf %32, %39 : vector<1x384xf32>
    %c16 = arith.constant 16 : index
    %41 = memref.load %arg1[%c16] : memref<100xf32, #tpu.memory_space<smem>>
    %c65 = arith.constant 65 : index
    %42 = memref.load %arg1[%c65] : memref<100xf32, #tpu.memory_space<smem>>
    %43 = vector.broadcast %41 : f32 to vector<1x384xf32>
    %44 = arith.mulf %43, %16 : vector<1x384xf32>
    %45 = vector.broadcast %42 : f32 to vector<1x384xf32>
    %46 = arith.mulf %45, %22 : vector<1x384xf32>
    %47 = arith.addf %44, %46 : vector<1x384xf32>
    %48 = arith.addf %40, %47 : vector<1x384xf32>
    %c23 = arith.constant 23 : index
    %49 = memref.load %arg1[%c23] : memref<100xf32, #tpu.memory_space<smem>>
    %c72 = arith.constant 72 : index
    %50 = memref.load %arg1[%c72] : memref<100xf32, #tpu.memory_space<smem>>
    %51 = vector.broadcast %49 : f32 to vector<1x384xf32>
    %52 = arith.mulf %51, %11 : vector<1x384xf32>
    %53 = vector.broadcast %50 : f32 to vector<1x384xf32>
    %54 = arith.mulf %53, %12 : vector<1x384xf32>
    %55 = arith.addf %52, %54 : vector<1x384xf32>
    %56 = arith.addf %48, %55 : vector<1x384xf32>
    %c30 = arith.constant 30 : index
    %57 = memref.load %arg1[%c30] : memref<100xf32, #tpu.memory_space<smem>>
    %c79 = arith.constant 79 : index
    %58 = memref.load %arg1[%c79] : memref<100xf32, #tpu.memory_space<smem>>
    %59 = vector.broadcast %57 : f32 to vector<1x384xf32>
    %60 = arith.mulf %59, %17 : vector<1x384xf32>
    %61 = vector.broadcast %58 : f32 to vector<1x384xf32>
    %62 = arith.mulf %61, %23 : vector<1x384xf32>
    %63 = arith.addf %60, %62 : vector<1x384xf32>
    %64 = arith.addf %56, %63 : vector<1x384xf32>
    %c37 = arith.constant 37 : index
    %65 = memref.load %arg1[%c37] : memref<100xf32, #tpu.memory_space<smem>>
    %c86 = arith.constant 86 : index
    %66 = memref.load %arg1[%c86] : memref<100xf32, #tpu.memory_space<smem>>
    %67 = vector.broadcast %65 : f32 to vector<1x384xf32>
    %68 = arith.mulf %67, %18 : vector<1x384xf32>
    %69 = vector.broadcast %66 : f32 to vector<1x384xf32>
    %70 = arith.mulf %69, %24 : vector<1x384xf32>
    %71 = arith.addf %68, %70 : vector<1x384xf32>
    %72 = arith.addf %64, %71 : vector<1x384xf32>
    %c44 = arith.constant 44 : index
    %73 = memref.load %arg1[%c44] : memref<100xf32, #tpu.memory_space<smem>>
    %c93 = arith.constant 93 : index
    %74 = memref.load %arg1[%c93] : memref<100xf32, #tpu.memory_space<smem>>
    %75 = vector.broadcast %73 : f32 to vector<1x384xf32>
    %76 = arith.mulf %75, %19 : vector<1x384xf32>
    %77 = vector.broadcast %74 : f32 to vector<1x384xf32>
    %78 = arith.mulf %77, %25 : vector<1x384xf32>
    %79 = arith.addf %76, %78 : vector<1x384xf32>
    %80 = arith.addf %72, %79 : vector<1x384xf32>
    %c3_i32 = arith.constant 3 : i32
    %81 = tpu.dynamic_rotate %80 by %c3_i32 dim 1 : vector<1x384xf32>, i32 -> vector<1x384xf32>
    %82 = vector.extract_strided_slice %13 {offsets = [0, 0], sizes = [1, 384], strides = [1, 1]} : vector<8x384xf32> to vector<1x384xf32>
    %83 = arith.mulf %81, %82 : vector<1x384xf32>
    %c3 = arith.constant 3 : index
    %84 = memref.load %arg1[%c3] : memref<100xf32, #tpu.memory_space<smem>>
    %c52 = arith.constant 52 : index
    %85 = memref.load %arg1[%c52] : memref<100xf32, #tpu.memory_space<smem>>
    %86 = vector.broadcast %84 : f32 to vector<1x384xf32>
    %87 = arith.mulf %86, %14 : vector<1x384xf32>
    %88 = vector.broadcast %85 : f32 to vector<1x384xf32>
    %89 = arith.mulf %88, %20 : vector<1x384xf32>
    %90 = arith.addf %87, %89 : vector<1x384xf32>
    %c10 = arith.constant 10 : index
    %91 = memref.load %arg1[%c10] : memref<100xf32, #tpu.memory_space<smem>>
    %c59 = arith.constant 59 : index
    %92 = memref.load %arg1[%c59] : memref<100xf32, #tpu.memory_space<smem>>
    %93 = vector.broadcast %91 : f32 to vector<1x384xf32>
    %94 = arith.mulf %93, %15 : vector<1x384xf32>
    %95 = vector.broadcast %92 : f32 to vector<1x384xf32>
    %96 = arith.mulf %95, %21 : vector<1x384xf32>
    %97 = arith.addf %94, %96 : vector<1x384xf32>
    %98 = arith.addf %90, %97 : vector<1x384xf32>
    %c17 = arith.constant 17 : index
    %99 = memref.load %arg1[%c17] : memref<100xf32, #tpu.memory_space<smem>>
    %c66 = arith.constant 66 : index
    %100 = memref.load %arg1[%c66] : memref<100xf32, #tpu.memory_space<smem>>
    %101 = vector.broadcast %99 : f32 to vector<1x384xf32>
    %102 = arith.mulf %101, %16 : vector<1x384xf32>
    %103 = vector.broadcast %100 : f32 to vector<1x384xf32>
    %104 = arith.mulf %103, %22 : vector<1x384xf32>
    %105 = arith.addf %102, %104 : vector<1x384xf32>
    %106 = arith.addf %98, %105 : vector<1x384xf32>
    %c24 = arith.constant 24 : index
    %107 = memref.load %arg1[%c24] : memref<100xf32, #tpu.memory_space<smem>>
    %c73 = arith.constant 73 : index
    %108 = memref.load %arg1[%c73] : memref<100xf32, #tpu.memory_space<smem>>
    %109 = vector.broadcast %107 : f32 to vector<1x384xf32>
    %110 = arith.mulf %109, %11 : vector<1x384xf32>
    %111 = vector.broadcast %108 : f32 to vector<1x384xf32>
    %112 = arith.mulf %111, %12 : vector<1x384xf32>
    %113 = arith.addf %110, %112 : vector<1x384xf32>
    %114 = arith.addf %106, %113 : vector<1x384xf32>
    %c31 = arith.constant 31 : index
    %115 = memref.load %arg1[%c31] : memref<100xf32, #tpu.memory_space<smem>>
    %c80 = arith.constant 80 : index
    %116 = memref.load %arg1[%c80] : memref<100xf32, #tpu.memory_space<smem>>
    %117 = vector.broadcast %115 : f32 to vector<1x384xf32>
    %118 = arith.mulf %117, %17 : vector<1x384xf32>
    %119 = vector.broadcast %116 : f32 to vector<1x384xf32>
    %120 = arith.mulf %119, %23 : vector<1x384xf32>
    %121 = arith.addf %118, %120 : vector<1x384xf32>
    %122 = arith.addf %114, %121 : vector<1x384xf32>
    %c38 = arith.constant 38 : index
    %123 = memref.load %arg1[%c38] : memref<100xf32, #tpu.memory_space<smem>>
    %c87 = arith.constant 87 : index
    %124 = memref.load %arg1[%c87] : memref<100xf32, #tpu.memory_space<smem>>
    %125 = vector.broadcast %123 : f32 to vector<1x384xf32>
    %126 = arith.mulf %125, %18 : vector<1x384xf32>
    %127 = vector.broadcast %124 : f32 to vector<1x384xf32>
    %128 = arith.mulf %127, %24 : vector<1x384xf32>
    %129 = arith.addf %126, %128 : vector<1x384xf32>
    %130 = arith.addf %122, %129 : vector<1x384xf32>
    %c45 = arith.constant 45 : index
    %131 = memref.load %arg1[%c45] : memref<100xf32, #tpu.memory_space<smem>>
    %c94 = arith.constant 94 : index
    %132 = memref.load %arg1[%c94] : memref<100xf32, #tpu.memory_space<smem>>
    %133 = vector.broadcast %131 : f32 to vector<1x384xf32>
    %134 = arith.mulf %133, %19 : vector<1x384xf32>
    %135 = vector.broadcast %132 : f32 to vector<1x384xf32>
    %136 = arith.mulf %135, %25 : vector<1x384xf32>
    %137 = arith.addf %134, %136 : vector<1x384xf32>
    %138 = arith.addf %130, %137 : vector<1x384xf32>
    %c2_i32 = arith.constant 2 : i32
    %139 = tpu.dynamic_rotate %138 by %c2_i32 dim 1 : vector<1x384xf32>, i32 -> vector<1x384xf32>
    %140 = vector.extract_strided_slice %13 {offsets = [1, 0], sizes = [1, 384], strides = [1, 1]} : vector<8x384xf32> to vector<1x384xf32>
    %141 = arith.mulf %139, %140 : vector<1x384xf32>
    %142 = arith.addf %83, %141 : vector<1x384xf32>
    %c4 = arith.constant 4 : index
    %143 = memref.load %arg1[%c4] : memref<100xf32, #tpu.memory_space<smem>>
    %c53 = arith.constant 53 : index
    %144 = memref.load %arg1[%c53] : memref<100xf32, #tpu.memory_space<smem>>
    %145 = vector.broadcast %143 : f32 to vector<1x384xf32>
    %146 = arith.mulf %145, %14 : vector<1x384xf32>
    %147 = vector.broadcast %144 : f32 to vector<1x384xf32>
    %148 = arith.mulf %147, %20 : vector<1x384xf32>
    %149 = arith.addf %146, %148 : vector<1x384xf32>
    %c11 = arith.constant 11 : index
    %150 = memref.load %arg1[%c11] : memref<100xf32, #tpu.memory_space<smem>>
    %c60 = arith.constant 60 : index
    %151 = memref.load %arg1[%c60] : memref<100xf32, #tpu.memory_space<smem>>
    %152 = vector.broadcast %150 : f32 to vector<1x384xf32>
    %153 = arith.mulf %152, %15 : vector<1x384xf32>
    %154 = vector.broadcast %151 : f32 to vector<1x384xf32>
    %155 = arith.mulf %154, %21 : vector<1x384xf32>
    %156 = arith.addf %153, %155 : vector<1x384xf32>
    %157 = arith.addf %149, %156 : vector<1x384xf32>
    %c18 = arith.constant 18 : index
    %158 = memref.load %arg1[%c18] : memref<100xf32, #tpu.memory_space<smem>>
    %c67 = arith.constant 67 : index
    %159 = memref.load %arg1[%c67] : memref<100xf32, #tpu.memory_space<smem>>
    %160 = vector.broadcast %158 : f32 to vector<1x384xf32>
    %161 = arith.mulf %160, %16 : vector<1x384xf32>
    %162 = vector.broadcast %159 : f32 to vector<1x384xf32>
    %163 = arith.mulf %162, %22 : vector<1x384xf32>
    %164 = arith.addf %161, %163 : vector<1x384xf32>
    %165 = arith.addf %157, %164 : vector<1x384xf32>
    %c25 = arith.constant 25 : index
    %166 = memref.load %arg1[%c25] : memref<100xf32, #tpu.memory_space<smem>>
    %c74 = arith.constant 74 : index
    %167 = memref.load %arg1[%c74] : memref<100xf32, #tpu.memory_space<smem>>
    %168 = vector.broadcast %166 : f32 to vector<1x384xf32>
    %169 = arith.mulf %168, %11 : vector<1x384xf32>
    %170 = vector.broadcast %167 : f32 to vector<1x384xf32>
    %171 = arith.mulf %170, %12 : vector<1x384xf32>
    %172 = arith.addf %169, %171 : vector<1x384xf32>
    %173 = arith.addf %165, %172 : vector<1x384xf32>
    %c32 = arith.constant 32 : index
    %174 = memref.load %arg1[%c32] : memref<100xf32, #tpu.memory_space<smem>>
    %c81 = arith.constant 81 : index
    %175 = memref.load %arg1[%c81] : memref<100xf32, #tpu.memory_space<smem>>
    %176 = vector.broadcast %174 : f32 to vector<1x384xf32>
    %177 = arith.mulf %176, %17 : vector<1x384xf32>
    %178 = vector.broadcast %175 : f32 to vector<1x384xf32>
    %179 = arith.mulf %178, %23 : vector<1x384xf32>
    %180 = arith.addf %177, %179 : vector<1x384xf32>
    %181 = arith.addf %173, %180 : vector<1x384xf32>
    %c39 = arith.constant 39 : index
    %182 = memref.load %arg1[%c39] : memref<100xf32, #tpu.memory_space<smem>>
    %c88 = arith.constant 88 : index
    %183 = memref.load %arg1[%c88] : memref<100xf32, #tpu.memory_space<smem>>
    %184 = vector.broadcast %182 : f32 to vector<1x384xf32>
    %185 = arith.mulf %184, %18 : vector<1x384xf32>
    %186 = vector.broadcast %183 : f32 to vector<1x384xf32>
    %187 = arith.mulf %186, %24 : vector<1x384xf32>
    %188 = arith.addf %185, %187 : vector<1x384xf32>
    %189 = arith.addf %181, %188 : vector<1x384xf32>
    %c46 = arith.constant 46 : index
    %190 = memref.load %arg1[%c46] : memref<100xf32, #tpu.memory_space<smem>>
    %c95 = arith.constant 95 : index
    %191 = memref.load %arg1[%c95] : memref<100xf32, #tpu.memory_space<smem>>
    %192 = vector.broadcast %190 : f32 to vector<1x384xf32>
    %193 = arith.mulf %192, %19 : vector<1x384xf32>
    %194 = vector.broadcast %191 : f32 to vector<1x384xf32>
    %195 = arith.mulf %194, %25 : vector<1x384xf32>
    %196 = arith.addf %193, %195 : vector<1x384xf32>
    %197 = arith.addf %189, %196 : vector<1x384xf32>
    %c1_i32 = arith.constant 1 : i32
    %198 = tpu.dynamic_rotate %197 by %c1_i32 dim 1 : vector<1x384xf32>, i32 -> vector<1x384xf32>
    %199 = vector.extract_strided_slice %13 {offsets = [2, 0], sizes = [1, 384], strides = [1, 1]} : vector<8x384xf32> to vector<1x384xf32>
    %200 = arith.mulf %198, %199 : vector<1x384xf32>
    %201 = arith.addf %142, %200 : vector<1x384xf32>
    %c5 = arith.constant 5 : index
    %202 = memref.load %arg1[%c5] : memref<100xf32, #tpu.memory_space<smem>>
    %c54 = arith.constant 54 : index
    %203 = memref.load %arg1[%c54] : memref<100xf32, #tpu.memory_space<smem>>
    %204 = vector.broadcast %202 : f32 to vector<1x384xf32>
    %205 = arith.mulf %204, %14 : vector<1x384xf32>
    %206 = vector.broadcast %203 : f32 to vector<1x384xf32>
    %207 = arith.mulf %206, %20 : vector<1x384xf32>
    %208 = arith.addf %205, %207 : vector<1x384xf32>
    %c12 = arith.constant 12 : index
    %209 = memref.load %arg1[%c12] : memref<100xf32, #tpu.memory_space<smem>>
    %c61 = arith.constant 61 : index
    %210 = memref.load %arg1[%c61] : memref<100xf32, #tpu.memory_space<smem>>
    %211 = vector.broadcast %209 : f32 to vector<1x384xf32>
    %212 = arith.mulf %211, %15 : vector<1x384xf32>
    %213 = vector.broadcast %210 : f32 to vector<1x384xf32>
    %214 = arith.mulf %213, %21 : vector<1x384xf32>
    %215 = arith.addf %212, %214 : vector<1x384xf32>
    %216 = arith.addf %208, %215 : vector<1x384xf32>
    %c19 = arith.constant 19 : index
    %217 = memref.load %arg1[%c19] : memref<100xf32, #tpu.memory_space<smem>>
    %c68 = arith.constant 68 : index
    %218 = memref.load %arg1[%c68] : memref<100xf32, #tpu.memory_space<smem>>
    %219 = vector.broadcast %217 : f32 to vector<1x384xf32>
    %220 = arith.mulf %219, %16 : vector<1x384xf32>
    %221 = vector.broadcast %218 : f32 to vector<1x384xf32>
    %222 = arith.mulf %221, %22 : vector<1x384xf32>
    %223 = arith.addf %220, %222 : vector<1x384xf32>
    %224 = arith.addf %216, %223 : vector<1x384xf32>
    %c26 = arith.constant 26 : index
    %225 = memref.load %arg1[%c26] : memref<100xf32, #tpu.memory_space<smem>>
    %c75 = arith.constant 75 : index
    %226 = memref.load %arg1[%c75] : memref<100xf32, #tpu.memory_space<smem>>
    %227 = vector.broadcast %225 : f32 to vector<1x384xf32>
    %228 = arith.mulf %227, %11 : vector<1x384xf32>
    %229 = vector.broadcast %226 : f32 to vector<1x384xf32>
    %230 = arith.mulf %229, %12 : vector<1x384xf32>
    %231 = arith.addf %228, %230 : vector<1x384xf32>
    %232 = arith.addf %224, %231 : vector<1x384xf32>
    %c33 = arith.constant 33 : index
    %233 = memref.load %arg1[%c33] : memref<100xf32, #tpu.memory_space<smem>>
    %c82 = arith.constant 82 : index
    %234 = memref.load %arg1[%c82] : memref<100xf32, #tpu.memory_space<smem>>
    %235 = vector.broadcast %233 : f32 to vector<1x384xf32>
    %236 = arith.mulf %235, %17 : vector<1x384xf32>
    %237 = vector.broadcast %234 : f32 to vector<1x384xf32>
    %238 = arith.mulf %237, %23 : vector<1x384xf32>
    %239 = arith.addf %236, %238 : vector<1x384xf32>
    %240 = arith.addf %232, %239 : vector<1x384xf32>
    %c40 = arith.constant 40 : index
    %241 = memref.load %arg1[%c40] : memref<100xf32, #tpu.memory_space<smem>>
    %c89 = arith.constant 89 : index
    %242 = memref.load %arg1[%c89] : memref<100xf32, #tpu.memory_space<smem>>
    %243 = vector.broadcast %241 : f32 to vector<1x384xf32>
    %244 = arith.mulf %243, %18 : vector<1x384xf32>
    %245 = vector.broadcast %242 : f32 to vector<1x384xf32>
    %246 = arith.mulf %245, %24 : vector<1x384xf32>
    %247 = arith.addf %244, %246 : vector<1x384xf32>
    %248 = arith.addf %240, %247 : vector<1x384xf32>
    %c47 = arith.constant 47 : index
    %249 = memref.load %arg1[%c47] : memref<100xf32, #tpu.memory_space<smem>>
    %c96 = arith.constant 96 : index
    %250 = memref.load %arg1[%c96] : memref<100xf32, #tpu.memory_space<smem>>
    %251 = vector.broadcast %249 : f32 to vector<1x384xf32>
    %252 = arith.mulf %251, %19 : vector<1x384xf32>
    %253 = vector.broadcast %250 : f32 to vector<1x384xf32>
    %254 = arith.mulf %253, %25 : vector<1x384xf32>
    %255 = arith.addf %252, %254 : vector<1x384xf32>
    %256 = arith.addf %248, %255 : vector<1x384xf32>
    %257 = arith.addf %201, %256 : vector<1x384xf32>
    %c6 = arith.constant 6 : index
    %258 = memref.load %arg1[%c6] : memref<100xf32, #tpu.memory_space<smem>>
    %c55 = arith.constant 55 : index
    %259 = memref.load %arg1[%c55] : memref<100xf32, #tpu.memory_space<smem>>
    %260 = vector.broadcast %258 : f32 to vector<1x384xf32>
    %261 = arith.mulf %260, %14 : vector<1x384xf32>
    %262 = vector.broadcast %259 : f32 to vector<1x384xf32>
    %263 = arith.mulf %262, %20 : vector<1x384xf32>
    %264 = arith.addf %261, %263 : vector<1x384xf32>
    %c13 = arith.constant 13 : index
    %265 = memref.load %arg1[%c13] : memref<100xf32, #tpu.memory_space<smem>>
    %c62 = arith.constant 62 : index
    %266 = memref.load %arg1[%c62] : memref<100xf32, #tpu.memory_space<smem>>
    %267 = vector.broadcast %265 : f32 to vector<1x384xf32>
    %268 = arith.mulf %267, %15 : vector<1x384xf32>
    %269 = vector.broadcast %266 : f32 to vector<1x384xf32>
    %270 = arith.mulf %269, %21 : vector<1x384xf32>
    %271 = arith.addf %268, %270 : vector<1x384xf32>
    %272 = arith.addf %264, %271 : vector<1x384xf32>
    %c20 = arith.constant 20 : index
    %273 = memref.load %arg1[%c20] : memref<100xf32, #tpu.memory_space<smem>>
    %c69 = arith.constant 69 : index
    %274 = memref.load %arg1[%c69] : memref<100xf32, #tpu.memory_space<smem>>
    %275 = vector.broadcast %273 : f32 to vector<1x384xf32>
    %276 = arith.mulf %275, %16 : vector<1x384xf32>
    %277 = vector.broadcast %274 : f32 to vector<1x384xf32>
    %278 = arith.mulf %277, %22 : vector<1x384xf32>
    %279 = arith.addf %276, %278 : vector<1x384xf32>
    %280 = arith.addf %272, %279 : vector<1x384xf32>
    %c27 = arith.constant 27 : index
    %281 = memref.load %arg1[%c27] : memref<100xf32, #tpu.memory_space<smem>>
    %c76 = arith.constant 76 : index
    %282 = memref.load %arg1[%c76] : memref<100xf32, #tpu.memory_space<smem>>
    %283 = vector.broadcast %281 : f32 to vector<1x384xf32>
    %284 = arith.mulf %283, %11 : vector<1x384xf32>
    %285 = vector.broadcast %282 : f32 to vector<1x384xf32>
    %286 = arith.mulf %285, %12 : vector<1x384xf32>
    %287 = arith.addf %284, %286 : vector<1x384xf32>
    %288 = arith.addf %280, %287 : vector<1x384xf32>
    %c34 = arith.constant 34 : index
    %289 = memref.load %arg1[%c34] : memref<100xf32, #tpu.memory_space<smem>>
    %c83 = arith.constant 83 : index
    %290 = memref.load %arg1[%c83] : memref<100xf32, #tpu.memory_space<smem>>
    %291 = vector.broadcast %289 : f32 to vector<1x384xf32>
    %292 = arith.mulf %291, %17 : vector<1x384xf32>
    %293 = vector.broadcast %290 : f32 to vector<1x384xf32>
    %294 = arith.mulf %293, %23 : vector<1x384xf32>
    %295 = arith.addf %292, %294 : vector<1x384xf32>
    %296 = arith.addf %288, %295 : vector<1x384xf32>
    %c41 = arith.constant 41 : index
    %297 = memref.load %arg1[%c41] : memref<100xf32, #tpu.memory_space<smem>>
    %c90 = arith.constant 90 : index
    %298 = memref.load %arg1[%c90] : memref<100xf32, #tpu.memory_space<smem>>
    %299 = vector.broadcast %297 : f32 to vector<1x384xf32>
    %300 = arith.mulf %299, %18 : vector<1x384xf32>
    %301 = vector.broadcast %298 : f32 to vector<1x384xf32>
    %302 = arith.mulf %301, %24 : vector<1x384xf32>
    %303 = arith.addf %300, %302 : vector<1x384xf32>
    %304 = arith.addf %296, %303 : vector<1x384xf32>
    %c48 = arith.constant 48 : index
    %305 = memref.load %arg1[%c48] : memref<100xf32, #tpu.memory_space<smem>>
    %c97 = arith.constant 97 : index
    %306 = memref.load %arg1[%c97] : memref<100xf32, #tpu.memory_space<smem>>
    %307 = vector.broadcast %305 : f32 to vector<1x384xf32>
    %308 = arith.mulf %307, %19 : vector<1x384xf32>
    %309 = vector.broadcast %306 : f32 to vector<1x384xf32>
    %310 = arith.mulf %309, %25 : vector<1x384xf32>
    %311 = arith.addf %308, %310 : vector<1x384xf32>
    %312 = arith.addf %304, %311 : vector<1x384xf32>
    %c383_i32 = arith.constant 383 : i32
    %313 = tpu.dynamic_rotate %312 by %c383_i32 dim 1 : vector<1x384xf32>, i32 -> vector<1x384xf32>
    %314 = vector.extract_strided_slice %13 {offsets = [4, 0], sizes = [1, 384], strides = [1, 1]} : vector<8x384xf32> to vector<1x384xf32>
    %315 = arith.mulf %313, %314 : vector<1x384xf32>
    %316 = arith.addf %257, %315 : vector<1x384xf32>
    %c7 = arith.constant 7 : index
    %317 = memref.load %arg1[%c7] : memref<100xf32, #tpu.memory_space<smem>>
    %c56 = arith.constant 56 : index
    %318 = memref.load %arg1[%c56] : memref<100xf32, #tpu.memory_space<smem>>
    %319 = vector.broadcast %317 : f32 to vector<1x384xf32>
    %320 = arith.mulf %319, %14 : vector<1x384xf32>
    %321 = vector.broadcast %318 : f32 to vector<1x384xf32>
    %322 = arith.mulf %321, %20 : vector<1x384xf32>
    %323 = arith.addf %320, %322 : vector<1x384xf32>
    %c14 = arith.constant 14 : index
    %324 = memref.load %arg1[%c14] : memref<100xf32, #tpu.memory_space<smem>>
    %c63 = arith.constant 63 : index
    %325 = memref.load %arg1[%c63] : memref<100xf32, #tpu.memory_space<smem>>
    %326 = vector.broadcast %324 : f32 to vector<1x384xf32>
    %327 = arith.mulf %326, %15 : vector<1x384xf32>
    %328 = vector.broadcast %325 : f32 to vector<1x384xf32>
    %329 = arith.mulf %328, %21 : vector<1x384xf32>
    %330 = arith.addf %327, %329 : vector<1x384xf32>
    %331 = arith.addf %323, %330 : vector<1x384xf32>
    %c21 = arith.constant 21 : index
    %332 = memref.load %arg1[%c21] : memref<100xf32, #tpu.memory_space<smem>>
    %c70 = arith.constant 70 : index
    %333 = memref.load %arg1[%c70] : memref<100xf32, #tpu.memory_space<smem>>
    %334 = vector.broadcast %332 : f32 to vector<1x384xf32>
    %335 = arith.mulf %334, %16 : vector<1x384xf32>
    %336 = vector.broadcast %333 : f32 to vector<1x384xf32>
    %337 = arith.mulf %336, %22 : vector<1x384xf32>
    %338 = arith.addf %335, %337 : vector<1x384xf32>
    %339 = arith.addf %331, %338 : vector<1x384xf32>
    %c28 = arith.constant 28 : index
    %340 = memref.load %arg1[%c28] : memref<100xf32, #tpu.memory_space<smem>>
    %c77 = arith.constant 77 : index
    %341 = memref.load %arg1[%c77] : memref<100xf32, #tpu.memory_space<smem>>
    %342 = vector.broadcast %340 : f32 to vector<1x384xf32>
    %343 = arith.mulf %342, %11 : vector<1x384xf32>
    %344 = vector.broadcast %341 : f32 to vector<1x384xf32>
    %345 = arith.mulf %344, %12 : vector<1x384xf32>
    %346 = arith.addf %343, %345 : vector<1x384xf32>
    %347 = arith.addf %339, %346 : vector<1x384xf32>
    %c35 = arith.constant 35 : index
    %348 = memref.load %arg1[%c35] : memref<100xf32, #tpu.memory_space<smem>>
    %c84 = arith.constant 84 : index
    %349 = memref.load %arg1[%c84] : memref<100xf32, #tpu.memory_space<smem>>
    %350 = vector.broadcast %348 : f32 to vector<1x384xf32>
    %351 = arith.mulf %350, %17 : vector<1x384xf32>
    %352 = vector.broadcast %349 : f32 to vector<1x384xf32>
    %353 = arith.mulf %352, %23 : vector<1x384xf32>
    %354 = arith.addf %351, %353 : vector<1x384xf32>
    %355 = arith.addf %347, %354 : vector<1x384xf32>
    %c42 = arith.constant 42 : index
    %356 = memref.load %arg1[%c42] : memref<100xf32, #tpu.memory_space<smem>>
    %c91 = arith.constant 91 : index
    %357 = memref.load %arg1[%c91] : memref<100xf32, #tpu.memory_space<smem>>
    %358 = vector.broadcast %356 : f32 to vector<1x384xf32>
    %359 = arith.mulf %358, %18 : vector<1x384xf32>
    %360 = vector.broadcast %357 : f32 to vector<1x384xf32>
    %361 = arith.mulf %360, %24 : vector<1x384xf32>
    %362 = arith.addf %359, %361 : vector<1x384xf32>
    %363 = arith.addf %355, %362 : vector<1x384xf32>
    %c49 = arith.constant 49 : index
    %364 = memref.load %arg1[%c49] : memref<100xf32, #tpu.memory_space<smem>>
    %c98 = arith.constant 98 : index
    %365 = memref.load %arg1[%c98] : memref<100xf32, #tpu.memory_space<smem>>
    %366 = vector.broadcast %364 : f32 to vector<1x384xf32>
    %367 = arith.mulf %366, %19 : vector<1x384xf32>
    %368 = vector.broadcast %365 : f32 to vector<1x384xf32>
    %369 = arith.mulf %368, %25 : vector<1x384xf32>
    %370 = arith.addf %367, %369 : vector<1x384xf32>
    %371 = arith.addf %363, %370 : vector<1x384xf32>
    %c382_i32 = arith.constant 382 : i32
    %372 = tpu.dynamic_rotate %371 by %c382_i32 dim 1 : vector<1x384xf32>, i32 -> vector<1x384xf32>
    %373 = vector.extract_strided_slice %13 {offsets = [5, 0], sizes = [1, 384], strides = [1, 1]} : vector<8x384xf32> to vector<1x384xf32>
    %374 = arith.mulf %372, %373 : vector<1x384xf32>
    %375 = arith.addf %316, %374 : vector<1x384xf32>
    %c8 = arith.constant 8 : index
    %376 = memref.load %arg1[%c8] : memref<100xf32, #tpu.memory_space<smem>>
    %c57 = arith.constant 57 : index
    %377 = memref.load %arg1[%c57] : memref<100xf32, #tpu.memory_space<smem>>
    %378 = vector.broadcast %376 : f32 to vector<1x384xf32>
    %379 = arith.mulf %378, %14 : vector<1x384xf32>
    %380 = vector.broadcast %377 : f32 to vector<1x384xf32>
    %381 = arith.mulf %380, %20 : vector<1x384xf32>
    %382 = arith.addf %379, %381 : vector<1x384xf32>
    %c15 = arith.constant 15 : index
    %383 = memref.load %arg1[%c15] : memref<100xf32, #tpu.memory_space<smem>>
    %c64 = arith.constant 64 : index
    %384 = memref.load %arg1[%c64] : memref<100xf32, #tpu.memory_space<smem>>
    %385 = vector.broadcast %383 : f32 to vector<1x384xf32>
    %386 = arith.mulf %385, %15 : vector<1x384xf32>
    %387 = vector.broadcast %384 : f32 to vector<1x384xf32>
    %388 = arith.mulf %387, %21 : vector<1x384xf32>
    %389 = arith.addf %386, %388 : vector<1x384xf32>
    %390 = arith.addf %382, %389 : vector<1x384xf32>
    %c22 = arith.constant 22 : index
    %391 = memref.load %arg1[%c22] : memref<100xf32, #tpu.memory_space<smem>>
    %c71 = arith.constant 71 : index
    %392 = memref.load %arg1[%c71] : memref<100xf32, #tpu.memory_space<smem>>
    %393 = vector.broadcast %391 : f32 to vector<1x384xf32>
    %394 = arith.mulf %393, %16 : vector<1x384xf32>
    %395 = vector.broadcast %392 : f32 to vector<1x384xf32>
    %396 = arith.mulf %395, %22 : vector<1x384xf32>
    %397 = arith.addf %394, %396 : vector<1x384xf32>
    %398 = arith.addf %390, %397 : vector<1x384xf32>
    %c29 = arith.constant 29 : index
    %399 = memref.load %arg1[%c29] : memref<100xf32, #tpu.memory_space<smem>>
    %c78 = arith.constant 78 : index
    %400 = memref.load %arg1[%c78] : memref<100xf32, #tpu.memory_space<smem>>
    %401 = vector.broadcast %399 : f32 to vector<1x384xf32>
    %402 = arith.mulf %401, %11 : vector<1x384xf32>
    %403 = vector.broadcast %400 : f32 to vector<1x384xf32>
    %404 = arith.mulf %403, %12 : vector<1x384xf32>
    %405 = arith.addf %402, %404 : vector<1x384xf32>
    %406 = arith.addf %398, %405 : vector<1x384xf32>
    %c36 = arith.constant 36 : index
    %407 = memref.load %arg1[%c36] : memref<100xf32, #tpu.memory_space<smem>>
    %c85 = arith.constant 85 : index
    %408 = memref.load %arg1[%c85] : memref<100xf32, #tpu.memory_space<smem>>
    %409 = vector.broadcast %407 : f32 to vector<1x384xf32>
    %410 = arith.mulf %409, %17 : vector<1x384xf32>
    %411 = vector.broadcast %408 : f32 to vector<1x384xf32>
    %412 = arith.mulf %411, %23 : vector<1x384xf32>
    %413 = arith.addf %410, %412 : vector<1x384xf32>
    %414 = arith.addf %406, %413 : vector<1x384xf32>
    %c43 = arith.constant 43 : index
    %415 = memref.load %arg1[%c43] : memref<100xf32, #tpu.memory_space<smem>>
    %c92 = arith.constant 92 : index
    %416 = memref.load %arg1[%c92] : memref<100xf32, #tpu.memory_space<smem>>
    %417 = vector.broadcast %415 : f32 to vector<1x384xf32>
    %418 = arith.mulf %417, %18 : vector<1x384xf32>
    %419 = vector.broadcast %416 : f32 to vector<1x384xf32>
    %420 = arith.mulf %419, %24 : vector<1x384xf32>
    %421 = arith.addf %418, %420 : vector<1x384xf32>
    %422 = arith.addf %414, %421 : vector<1x384xf32>
    %c50 = arith.constant 50 : index
    %423 = memref.load %arg1[%c50] : memref<100xf32, #tpu.memory_space<smem>>
    %c99 = arith.constant 99 : index
    %424 = memref.load %arg1[%c99] : memref<100xf32, #tpu.memory_space<smem>>
    %425 = vector.broadcast %423 : f32 to vector<1x384xf32>
    %426 = arith.mulf %425, %19 : vector<1x384xf32>
    %427 = vector.broadcast %424 : f32 to vector<1x384xf32>
    %428 = arith.mulf %427, %25 : vector<1x384xf32>
    %429 = arith.addf %426, %428 : vector<1x384xf32>
    %430 = arith.addf %422, %429 : vector<1x384xf32>
    %c381_i32 = arith.constant 381 : i32
    %431 = tpu.dynamic_rotate %430 by %c381_i32 dim 1 : vector<1x384xf32>, i32 -> vector<1x384xf32>
    %432 = vector.extract_strided_slice %13 {offsets = [6, 0], sizes = [1, 384], strides = [1, 1]} : vector<8x384xf32> to vector<1x384xf32>
    %433 = arith.mulf %431, %432 : vector<1x384xf32>
    %434 = arith.addf %375, %433 : vector<1x384xf32>
    %435 = vector.extract_strided_slice %434 {offsets = [0, 0], sizes = [1, 256], strides = [1, 1]} : vector<1x384xf32> to vector<1x256xf32>
    %c0_25 = arith.constant 0 : index
    %436 = memref.load %arg1[%c0_25] : memref<100xf32, #tpu.memory_space<smem>>
    %437 = vector.broadcast %436 : f32 to vector<1x256xf32>
    %438 = arith.mulf %435, %437 : vector<1x256xf32>
    %c1 = arith.constant 1 : index
    %439 = memref.load %arg1[%c1] : memref<100xf32, #tpu.memory_space<smem>>
    %440 = vector.broadcast %439 : f32 to vector<1x256xf32>
    %441 = arith.addf %438, %440 : vector<1x256xf32>
    %442 = arith.negf %441 : vector<1x256xf32>
    %443 = math.exp %442 : vector<1x256xf32>
    %cst_26 = arith.constant 1.000000e+00 : f32
    %444 = vector.broadcast %cst_26 : f32 to vector<1x256xf32>
    %445 = arith.addf %444, %443 : vector<1x256xf32>
    %446 = arith.divf %444, %445 : vector<1x256xf32>
    %c0_27 = arith.constant 0 : index
    %c0_28 = arith.constant 0 : index
    %c0_29 = arith.constant 0 : index
    %447 = vector.load %arg3[%c0_27, %c0_28, %c0_29] : memref<1x4x256xf32, #tpu.memory_space<vmem>>, vector<1x4x256xf32>
    %448 = vector.shape_cast %446 : vector<1x256xf32> to vector<1x1x256xf32>
    %449 = vector.broadcast %448 : vector<1x1x256xf32> to vector<1x4x256xf32>
    %450 = arith.mulf %447, %449 : vector<1x4x256xf32>
    %c0_30 = arith.constant 0 : index
    %c0_31 = arith.constant 0 : index
    %c0_32 = arith.constant 0 : index
    %451 = vector.load %arg4[%c0_30, %c0_31, %c0_32] : memref<1x4x256xf32, #tpu.memory_space<vmem>>, vector<1x4x256xf32>
    tpu.vector_store %arg4[%c0_30, %c0_31, %c0_32], %450 {strides = array<i32>} : memref<1x4x256xf32, #tpu.memory_space<vmem>>, vector<1x4x256xf32>,
    return
  }
  func.func @transform_0(%arg0: i32) -> i32 {
    %c0_i32 = arith.constant 0 : i32
    %c0_i32_0 = arith.constant 0 : i32
    return %c0_i32 : i32
  }
  func.func @transform_1(%arg0: i32) -> (i32, i32) {
    %c0_i32 = arith.constant 0 : i32
    %c0_i32_0 = arith.constant 0 : i32
    %c0_i32_1 = arith.constant 0 : i32
    return %c0_i32, %c0_i32_0 : i32, i32
  }
  func.func @transform_2(%arg0: i32) -> (i32, i32, i32) {
    %c0_i32 = arith.constant 0 : i32
    %c0_i32_0 = arith.constant 0 : i32
    %c0_i32_1 = arith.constant 0 : i32
    return %arg0, %c0_i32, %c0_i32_0 : i32, i32, i32
  }
  func.func @transform_3(%arg0: i32) -> (i32, i32, i32) {
    %c0_i32 = arith.constant 0 : i32
    %c0_i32_0 = arith.constant 0 : i32
    %c0_i32_1 = arith.constant 0 : i32
    return %arg0, %c0_i32, %c0_i32_0 : i32, i32, i32
  }
}

</mosaic_0001>

<llo_original>
// kernel: tpu_custom_call.1
$region0: #{tpu_custom_call.1}
  #allocation0 [shape = 'u32[]', space=smem, size = 0x4, offset = 0x4, fixed_abs, tag = 'smem constant byte address 0x4 - core index']
  #allocation1 [shape = 'u32[144,128]{1,0:T(1,128)}', space=vmem, size = 0x12000, scoped, tag = 'internal scratch']
  #allocation2 [shape = 'f32[1,384]{1,0:T(1,128)}', space=vmem, size = 0x600, scoped, tag = 'scratch operand']
  #allocation3 [shape = 'f32[1,384]{1,0:T(1,128)}', space=vmem, size = 0x600, scoped, tag = 'scratch operand']
  %s0 = inlined_call_operand.hbm [shape: f32[100], index: 0, kind: input, shape index: {}]
  %s1 = inlined_call_operand.hbm [shape: f32[8,384], index: 1, kind: input, shape index: {}]
  %s2 = inlined_call_operand.hbm [shape: f32[2,4,256], index: 2, kind: input, shape index: {}]
  %s3 = inlined_call_operand.hbm [shape: f32[2,4,256], index: 3, kind: output, shape index: {}]
  %s4 = sld [smem:[#allocation0]]
  $region57: #{tpu_custom_call.1} parent=0
    _
  %s6 = ssub.s32 1, %s4
  %s7 = scalar_select 0, %s6, %s4
  $region1: #{tpu_custom_call.1} parent=0
    #allocation4 [shape = 'u8[512]{0}', space=smem, size = 0x200, scoped, tag = 'input window, operand 0, single buffered']
    #allocation5 [shape = 's32[2]{0}', space=sflag, size = 0x8, scoped, tag = 'scoped memory for tpu_custom_call.1']
    #allocation6 [shape = 's32[2]{0}', space=sflag, size = 0x8, scoped, tag = 'scoped memory for tpu_custom_call.1']
    #allocation7 [shape = 's32[2]{0}', space=sflag, size = 0x8, scoped, tag = 'scoped memory for tpu_custom_call.1']
    #allocation8 [shape = 'u8[12288]{0}', space=vmem, size = 0x3000, scoped, tag = 'input window, operand 1, single buffered']
    #allocation9 [shape = 'u8[8192]{0}', space=vmem, size = 0x2000, scoped, tag = 'input window, operand 2']
    #allocation10 [shape = 's32[2]{0}', space=sflag, size = 0x8, scoped, tag = 'scoped memory for tpu_custom_call.1']
    #allocation11 [shape = 'u8[8192]{0}', space=vmem, size = 0x2000, scoped, tag = 'output window, operand 0']
    %8 = vsyncpa [#allocation7], 0
    %9 = vsyncpa [#allocation5], 0
    %10 = vsyncpa [#allocation10], 0
    %s11 = scalar_lea.sflag [#allocation10], 1
    %12 = vsyncpa %s11, 0
    %13 = vsyncpa [#allocation6], 0
    %s14 = scalar_lea.sflag [#allocation6], 1
    %15 = vsyncpa %s14, 0
    loop: start=0, step=1, limit=4
    $region2: #{tpu_custom_call.1} parent=1 // loop_pre_header
      _
    $region3: #{tpu_custom_call.1} parent=1 // loop_header
      %s17 = sphi 0, %s21
      %p18 = scmp.ge.s32.totalorder %s17, 4
      %s25 = sphi 0, %s25
      %s27 = sphi 0, %s25
      %s28 = sphi 0, %s27
      %s42 = sphi 0, %s28
      %s46 = sphi 0, %s46
      %s48 = sphi 0, %s46
      %s49 = sphi 0, %s48
      %s63 = sphi 0, %s49
      %s69 = sphi 0, %s71
      %s72 = sphi 0, %s69
      %s73 = sphi 0, %s72
      %s89 = sphi 0, %s73
      %s95 = sphi 0, %s97
      %s98 = sphi 0, %s95
      %s99 = sphi 0, %s98
      %s115 = sphi 0, %s99
    $region4: #{tpu_custom_call.1} parent=1 // loop_header_branch
      %20 = sbr.rel (%p18) target = $region8
    $region5: #{tpu_custom_call.1} parent=1 // loop_body
      %s22 = ssub.s32 %s17, 1
      %s23 = ssub.s32 %s17, 2
      %s24 = sadd.s32 %s17, 1
      %s26 = sadd.s32 %s25, 1
      %p29 = scmp.eq.s32.totalorder %s17, 1
      %p30 = scmp.ne.s32.totalorder %s25, %s27
      %p31 = scmp.eq.s32.totalorder %s17, 0
      %p32 = por %p30, %p31
      %p33 = scmp.ne.s32.totalorder %s25, %s27
      %p34 = scmp.eq.s32.totalorder %s22, 1
      %p35 = por %p33, %p34
      %p36 = scmp.ne.s32.totalorder %s27, %s28
      %p37 = scmp.eq.s32.totalorder %s22, 0
      %p38 = por %p36, %p37
      %p39 = scmp.ne.s32.totalorder %s27, %s28
      %p40 = scmp.eq.s32.totalorder %s23, 1
      %p41 = por %p39, %p40
      %p43 = scmp.ne.s32.totalorder %s28, %s42
      %p44 = scmp.eq.s32.totalorder %s23, 0
      %p45 = por %p43, %p44
      %s47 = sadd.s32 %s46, 1
      %p50 = scmp.eq.s32.totalorder %s17, 1
      %p51 = scmp.ne.s32.totalorder %s46, %s48
      %p52 = scmp.eq.s32.totalorder %s17, 0
      %p53 = por %p51, %p52
      %p54 = scmp.ne.s32.totalorder %s46, %s48
      %p55 = scmp.eq.s32.totalorder %s22, 1
      %p56 = por %p54, %p55
      %p57 = scmp.ne.s32.totalorder %s48, %s49
      %p58 = scmp.eq.s32.totalorder %s22, 0
      %p59 = por %p57, %p58
      %p60 = scmp.ne.s32.totalorder %s48, %s49
      %p61 = scmp.eq.s32.totalorder %s23, 1
      %p62 = por %p60, %p61
      %p64 = scmp.ne.s32.totalorder %s49, %s63
      %p65 = scmp.eq.s32.totalorder %s23, 0
      %p66 = por %p64, %p65
      %s67 = ssub.s32 %s17, %s24
      %p68 = scmp.eq.s32.totalorder %s67, 0
      %s70 = sadd.s32 %s69, 1
      %s71 = scalar_select %p68, %s69, %s70
      %p74 = pneg %p68
      %p75 = scmp.eq.s32.totalorder %s17, 1
      %p76 = por %p74, %p75
      %p77 = scmp.ne.s32.totalorder %s69, %s72
      %p78 = scmp.eq.s32.totalorder %s17, 0
      %p79 = por %p77, %p78
      %p80 = scmp.ne.s32.totalorder %s69, %s72
      %p81 = scmp.eq.s32.totalorder %s22, 1
      %p82 = por %p80, %p81
      %p83 = scmp.ne.s32.totalorder %s72, %s73
      %p84 = scmp.eq.s32.totalorder %s22, 0
      %p85 = por %p83, %p84
      %p86 = scmp.ne.s32.totalorder %s72, %s73
      %p87 = scmp.eq.s32.totalorder %s23, 1
      %p88 = por %p86, %p87
      %p90 = scmp.ne.s32.totalorder %s73, %s89
      %p91 = scmp.eq.s32.totalorder %s23, 0
      %p92 = por %p90, %p91
      %s93 = ssub.s32 %s17, %s24
      %p94 = scmp.eq.s32.totalorder %s93, 0
      %s96 = sadd.s32 %s95, 1
      %s97 = scalar_select %p94, %s95, %s96
      %p100 = pneg %p94
      %p101 = scmp.eq.s32.totalorder %s17, 1
      %p102 = por %p100, %p101
      %p103 = scmp.ne.s32.totalorder %s95, %s98
      %p104 = scmp.eq.s32.totalorder %s17, 0
      %p105 = por %p103, %p104
      %p106 = scmp.ne.s32.totalorder %s95, %s98
      %p107 = scmp.eq.s32.totalorder %s22, 1
      %p108 = por %p106, %p107
      %p109 = scmp.ne.s32.totalorder %s98, %s99
      %p110 = scmp.eq.s32.totalorder %s22, 0
      %p111 = por %p109, %p110
      %p112 = scmp.ne.s32.totalorder %s98, %s99
      %p113 = scmp.eq.s32.totalorder %s23, 1
      %p114 = por %p112, %p113
      %p116 = scmp.ne.s32.totalorder %s99, %s115
      %p117 = scmp.eq.s32.totalorder %s23, 0
      %p118 = por %p116, %p117
      %p119 = scmp.le.s32.totalorder 1, %s17
      %p120 = scmp.lt.s32.totalorder %s17, 3
      %p121 = pnand %p119, %p120
      %p122 = pneg %p121
      // Predicated region
      $region9: #{tpu_custom_call.1} parent=5 // pred_check
        _
      $region10: #{tpu_custom_call.1} parent=5 // pred_check_branch
        %124 = sbr.rel (%p121) target = $region12
      $region11: #{tpu_custom_call.1} parent=5 // pred_region
        %s125 = ssub.s32 %s17, 1
        // Predicated region
        $region13: #{tpu_custom_call.1} parent=11 // pred_check
          %p126 = pneg %p38
        $region14: #{tpu_custom_call.1} parent=11 // pred_check_branch
          %128 = sbr.rel (%p126) target = $region16
        $region15: #{tpu_custom_call.1} parent=11 // pred_region
          %s130 = ssub.s32 16, 16
          %131 = vsyncadd [#allocation7], %s130
          %134 = dma.hbm_to_smem %s0, 16, [#allocation4], [#allocation7]
        $region16: #{tpu_custom_call.1} parent=11 // pred_fallthru
          _
        // Predicated region
        $region17: #{tpu_custom_call.1} parent=11 // pred_check
          %p135 = pneg %p59
        $region18: #{tpu_custom_call.1} parent=11 // pred_check_branch
          %137 = sbr.rel (%p135) target = $region20
        $region19: #{tpu_custom_call.1} parent=11 // pred_region
          %s139 = ssub.s32 384, 384
          %140 = vsyncadd [#allocation5], %s139
          %s142 = sshll.u32 [#allocation8], 4
          %s143 = int_to_ptr.vmem [resolvable:$true] %s142
          %145 = dma.hbm_to_vmem [thread:$0]  %s1, 384, %s143, [#allocation5]
        $region20: #{tpu_custom_call.1} parent=11 // pred_fallthru
          _
      $region12: #{tpu_custom_call.1} parent=5 // pred_fallthru
        _
      %p146 = scmp.lt.s32.totalorder %s17, 2
      // Predicated region
      $region21: #{tpu_custom_call.1} parent=5 // pred_check
        %p147 = pneg %p146
      $region22: #{tpu_custom_call.1} parent=5 // pred_check_branch
        %149 = sbr.rel (%p147) target = $region24
      $region23: #{tpu_custom_call.1} parent=5 // pred_region
        // Predicated region
        $region25: #{tpu_custom_call.1} parent=23 // pred_check
          %p150 = pneg %p79
        $region26: #{tpu_custom_call.1} parent=23 // pred_check_branch
          %152 = sbr.rel (%p150) target = $region28
        $region27: #{tpu_custom_call.1} parent=23 // pred_region
          %s153 = sand.u32 %s69, 1
          %s154 = scalar_lea.sflag [#allocation10], %s153
          %s155 = sand.u32 %s69, 1
          %s156 = smul.addr %s155, 8
          %s157 = scalar_lea.vmem [#allocation9], %s156
          %s159 = ssub.s32 128, 128
          %160 = vsyncadd %s154, %s159
          %s161 = smul.addr %s17, 2
          %s162 = smul.addr %s161, 64
          %s163 = scalar_lea.hbm %s2, %s162
          %s165 = sshll.u32 %s157, 4
          %s166 = int_to_ptr.vmem [resolvable:$true] %s165
          %168 = dma.hbm_to_vmem [thread:$0]  %s163, 128, %s166, %s154
        $region28: #{tpu_custom_call.1} parent=23 // pred_fallthru
          _
      $region24: #{tpu_custom_call.1} parent=5 // pred_fallthru
        _
      %p169 = scmp.le.s32.totalorder 1, %s17
      %p170 = scmp.lt.s32.totalorder %s17, 3
      %p171 = pnand %p169, %p170
      %p172 = pneg %p171
      // Predicated region
      $region29: #{tpu_custom_call.1} parent=5 // pred_check
        _
      $region30: #{tpu_custom_call.1} parent=5 // pred_check_branch
        %174 = sbr.rel (%p171) target = $region32
      $region31: #{tpu_custom_call.1} parent=5 // pred_region
        %s175 = ssub.s32 %s17, 1
        // Predicated region
        $region33: #{tpu_custom_call.1} parent=31 // pred_check
          %p176 = pneg %p38
        $region34: #{tpu_custom_call.1} parent=31 // pred_check_branch
          %178 = sbr.rel (%p176) target = $region36
        $region35: #{tpu_custom_call.1} parent=31 // pred_region
          %179 = dma.done [#allocation7], 16
        $region36: #{tpu_custom_call.1} parent=31 // pred_fallthru
          _
        // Predicated region
        $region37: #{tpu_custom_call.1} parent=31 // pred_check
          %p180 = pneg %p59
        $region38: #{tpu_custom_call.1} parent=31 // pred_check_branch
          %182 = sbr.rel (%p180) target = $region40
        $region39: #{tpu_custom_call.1} parent=31 // pred_region
          %183 = dma.done [#allocation5], 384
        $region40: #{tpu_custom_call.1} parent=31 // pred_fallthru
          _
        %s184 = sand.u32 %s72, 1
        %s185 = scalar_lea.sflag [#allocation10], %s184
        %s186 = sand.u32 %s72, 1
        %s187 = smul.addr %s186, 8
        %s188 = scalar_lea.vmem [#allocation9], %s187
        // Predicated region
        $region41: #{tpu_custom_call.1} parent=31 // pred_check
          %p189 = pneg %p85
        $region42: #{tpu_custom_call.1} parent=31 // pred_check_branch
          %191 = sbr.rel (%p189) target = $region44
        $region43: #{tpu_custom_call.1} parent=31 // pred_region
          %192 = dma.done %s185, 128
        $region44: #{tpu_custom_call.1} parent=31 // pred_fallthru
          _
        %193 = sfence
        %p194 = pneg %p38
        %p195 = pneg %p35
        %p196 = pneg %p59
        %p197 = pneg %p56
        %s198 = sand.u32 %s72, 1
        %s199 = scalar_lea.sflag [#allocation10], %s198
        %s200 = sand.u32 %s72, 1
        %s201 = smul.addr %s200, 8
        %s202 = scalar_lea.vmem [#allocation9], %s201
        %p203 = pneg %p85
        %p204 = pneg %p82
        %p205 = pneg %p111
        %p206 = pneg %p108
        %s207 = sand.u32 %s98, 1
        %s208 = scalar_lea.sflag [#allocation6], %s207
        %s209 = sand.u32 %s98, 1
        %s210 = smul.addr %s209, 8
        %s211 = scalar_lea.vmem [#allocation11], %s210
        %v212 = vld [vmem:[%s188] sm:$0xff]
        %v214 = vcombine.high %v212, %v212
        %vm216 = vcmask 1043456
        %v217 = vsel %vm216, %v212, -inf
        %v218 = vrot.slane %v217, 4
        %v219 = vmax.f32 %v217, %v218
        %v220 = vrot.slane %v219, 2
        %v221 = vmax.f32 %v219, %v220
        %v222 = vrot.slane %v221, 1
        %v223 = vmax.f32 %v221, %v222
        %v224 = vsel %vm216, %v214, -inf
        %v225 = vrot.slane %v224, 4
        %v226 = vmax.f32 %v224, %v225
        %v227 = vrot.slane %v226, 2
        %v228 = vmax.f32 %v226, %v227
        %v229 = vrot.slane %v228, 1
        %v230 = vmax.f32 %v228, %v229
        %v231 = vsel %vm216, %v212, 0.0
        %v232 = vrot.slane %v231, 4
        %v233 = vadd.f32 %v231, %v232
        %v234 = vrot.slane %v233, 2
        %v235 = vadd.f32 %v233, %v234
        %v236 = vrot.slane %v235, 1
        %v237 = vadd.f32 %v235, %v236
        %v238 = vsel %vm216, %v214, 0.0
        %v239 = vrot.slane %v238, 4
        %v240 = vadd.f32 %v238, %v239
        %v241 = vrot.slane %v240, 2
        %v242 = vadd.f32 %v240, %v241
        %v243 = vrot.slane %v242, 1
        %v244 = vadd.f32 %v242, %v243
        %v245 = vmul.f32 %v237, 0.25
        %v246 = vmul.f32 %v244, 0.25
        %v249 = vcombine.low %v223, %v230
        %v251 = vunpack.c.l.s4 1966171168
        %v252 = vunpack.c.0.s8 %v251
        %v253 = vlaneseq
        %v254 = vshrl.u32 %v253, 7
        %v255 = vsub.s32 %v252, %v254
        %v256 = vrot.slane %v249, %v255
        %v258 = vunpack.c.l.s4 1966171168
        %v259 = vunpack.c.0.s8 %v258
        %v260 = vlaneseq
        %v261 = vshrl.u32 %v260, 7
        %v262 = vsub.s32 %v259, %v261
        %v263 = vrot.slane %v256, %v262
        %v265 = vlaneseq
        %vm266 = vcmp.ge.s32.totalorder %v265, 0
        %vm267 = vcmp.lt.s32.totalorder %v265, 256
        %vm268 = vmand %vm266, %vm267
        %269 = vst.msk [vmem:[#allocation2] sm:$0x3] %vm268, %v263
        %v272 = vcombine.low %v245, %v246
        %v274 = vunpack.c.l.s4 1966171168
        %v275 = vunpack.c.0.s8 %v274
        %v276 = vlaneseq
        %v277 = vshrl.u32 %v276, 7
        %v278 = vsub.s32 %v275, %v277
        %v279 = vrot.slane %v272, %v278
        %v281 = vunpack.c.l.s4 1966171168
        %v282 = vunpack.c.0.s8 %v281
        %v283 = vlaneseq
        %v284 = vshrl.u32 %v283, 7
        %v285 = vsub.s32 %v282, %v284
        %v286 = vrot.slane %v279, %v285
        %288 = vst.msk [vmem:[#allocation3] sm:$0x3] %vm268, %v286
        %vm289 = vcmp.lt.s32.totalorder %v265, 128
        %vm290 = vmand %vm266, %vm289
        %291 = vst.msk [vmem:[#allocation2 + $0x2] sm:$0x1] %vm290, 0.0
        %292 = vst.msk [vmem:[#allocation3 + $0x2] sm:$0x1] %vm290, 0.0
        %v293 = vld [vmem:[#allocation2] sm:$0x7]
        %v294 = vld [vmem:[#allocation3] sm:$0x7]
        %v295 = vld [vmem:[#allocation8] sm:$0xff]
        %v296 = vld [vmem:[#allocation8 + $0x8] sm:$0xff]
        %v298 = vlaneseq
        %v299 = vshrl.u32 %v298, 7
        %v300 = vsub.s32 0, %v299
        %v301 = vrot.slane %v293, %v300
        %v302 = vlaneseq
        %v303 = vshrl.u32 %v302, 7
        %v304 = vsub.s32 1, %v303
        %v305 = vrot.slane %v293, %v304
        %v306 = vlaneseq
        %v307 = vshrl.u32 %v306, 7
        %v308 = vsub.s32 2, %v307
        %v309 = vrot.slane %v293, %v308
        %313 = vrot.lane.b32.xlu0 %v301, 48
        %v314 = vpop.permute.xlu0 %313
        %315 = vrot.lane.b32.xlu0 %v305, 48
        %v316 = vpop.permute.xlu0 %315
        %317 = vrot.lane.b32.xlu0 %v309, 48
        %v318 = vpop.permute.xlu0 %317
        %v319 = vlaneseq
        %v320 = vand.u32 %v319, 127
        %vm321 = vcmp.lt.s32.totalorder %v320, 48
        %v322 = vsel %vm321, %v316, %v318
        %v323 = vsel %vm321, %v314, %v316
        %v324 = vsel %vm321, %v318, %v314
        %325 = vrot.lane.b32.xlu0 %v301, 32
        %v326 = vpop.permute.xlu0 %325
        %327 = vrot.lane.b32.xlu0 %v305, 32
        %v328 = vpop.permute.xlu0 %327
        %329 = vrot.lane.b32.xlu0 %v309, 32
        %v330 = vpop.permute.xlu0 %329
        %vm331 = vcmp.lt.s32.totalorder %v320, 32
        %v332 = vsel %vm331, %v328, %v330
        %v333 = vsel %vm331, %v326, %v328
        %v334 = vsel %vm331, %v330, %v326
        %335 = vrot.lane.b32.xlu0 %v301, 16
        %v336 = vpop.permute.xlu0 %335
        %337 = vrot.lane.b32.xlu0 %v305, 16
        %v338 = vpop.permute.xlu0 %337
        %339 = vrot.lane.b32.xlu0 %v309, 16
        %v340 = vpop.permute.xlu0 %339
        %vm341 = vcmp.lt.s32.totalorder %v320, 16
        %v342 = vsel %vm341, %v338, %v340
        %v343 = vsel %vm341, %v336, %v338
        %v344 = vsel %vm341, %v340, %v336
        %345 = vrot.lane.b32.xlu0 %v301, 112
        %v346 = vpop.permute.xlu0 %345
        %347 = vrot.lane.b32.xlu0 %v305, 112
        %v348 = vpop.permute.xlu0 %347
        %349 = vrot.lane.b32.xlu0 %v309, 112
        %v350 = vpop.permute.xlu0 %349
        %vm351 = vcmp.lt.s32.totalorder %v320, 112
        %v352 = vsel %vm351, %v348, %v350
        %v353 = vsel %vm351, %v346, %v348
        %v354 = vsel %vm351, %v350, %v346
        %355 = vrot.lane.b32.xlu0 %v301, 96
        %v356 = vpop.permute.xlu0 %355
        %357 = vrot.lane.b32.xlu0 %v305, 96
        %v358 = vpop.permute.xlu0 %357
        %359 = vrot.lane.b32.xlu0 %v309, 96
        %v360 = vpop.permute.xlu0 %359
        %vm361 = vcmp.lt.s32.totalorder %v320, 96
        %v362 = vsel %vm361, %v358, %v360
        %v363 = vsel %vm361, %v356, %v358
        %v364 = vsel %vm361, %v360, %v356
        %365 = vrot.lane.b32.xlu0 %v301, 80
        %v366 = vpop.permute.xlu0 %365
        %367 = vrot.lane.b32.xlu0 %v305, 80
        %v368 = vpop.permute.xlu0 %367
        %369 = vrot.lane.b32.xlu0 %v309, 80
        %v370 = vpop.permute.xlu0 %369
        %vm371 = vcmp.lt.s32.totalorder %v320, 80
        %v372 = vsel %vm371, %v368, %v370
        %v373 = vsel %vm371, %v366, %v368
        %v374 = vsel %vm371, %v370, %v366
        %v376 = vlaneseq
        %v377 = vshrl.u32 %v376, 7
        %v378 = vsub.s32 0, %v377
        %v379 = vrot.slane %v294, %v378
        %v380 = vlaneseq
        %v381 = vshrl.u32 %v380, 7
        %v382 = vsub.s32 1, %v381
        %v383 = vrot.slane %v294, %v382
        %v384 = vlaneseq
        %v385 = vshrl.u32 %v384, 7
        %v386 = vsub.s32 2, %v385
        %v387 = vrot.slane %v294, %v386
        %391 = vrot.lane.b32.xlu0 %v379, 48
        %v392 = vpop.permute.xlu0 %391
        %393 = vrot.lane.b32.xlu0 %v383, 48
        %v394 = vpop.permute.xlu0 %393
        %395 = vrot.lane.b32.xlu0 %v387, 48
        %v396 = vpop.permute.xlu0 %395
        %v397 = vsel %vm321, %v394, %v396
        %v398 = vsel %vm321, %v392, %v394
        %v399 = vsel %vm321, %v396, %v392
        %400 = vrot.lane.b32.xlu0 %v379, 32
        %v401 = vpop.permute.xlu0 %400
        %402 = vrot.lane.b32.xlu0 %v383, 32
        %v403 = vpop.permute.xlu0 %402
        %404 = vrot.lane.b32.xlu0 %v387, 32
        %v405 = vpop.permute.xlu0 %404
        %v406 = vsel %vm331, %v403, %v405
        %v407 = vsel %vm331, %v401, %v403
        %v408 = vsel %vm331, %v405, %v401
        %409 = vrot.lane.b32.xlu0 %v379, 16
        %v410 = vpop.permute.xlu0 %409
        %411 = vrot.lane.b32.xlu0 %v383, 16
        %v412 = vpop.permute.xlu0 %411
        %413 = vrot.lane.b32.xlu0 %v387, 16
        %v414 = vpop.permute.xlu0 %413
        %v415 = vsel %vm341, %v412, %v414
        %v416 = vsel %vm341, %v410, %v412
        %v417 = vsel %vm341, %v414, %v410
        %418 = vrot.lane.b32.xlu0 %v379, 112
        %v419 = vpop.permute.xlu0 %418
        %420 = vrot.lane.b32.xlu0 %v383, 112
        %v421 = vpop.permute.xlu0 %420
        %422 = vrot.lane.b32.xlu0 %v387, 112
        %v423 = vpop.permute.xlu0 %422
        %v424 = vsel %vm351, %v421, %v423
        %v425 = vsel %vm351, %v419, %v421
        %v426 = vsel %vm351, %v423, %v419
        %427 = vrot.lane.b32.xlu0 %v379, 96
        %v428 = vpop.permute.xlu0 %427
        %429 = vrot.lane.b32.xlu0 %v383, 96
        %v430 = vpop.permute.xlu0 %429
        %431 = vrot.lane.b32.xlu0 %v387, 96
        %v432 = vpop.permute.xlu0 %431
        %v433 = vsel %vm361, %v430, %v432
        %v434 = vsel %vm361, %v428, %v430
        %v435 = vsel %vm361, %v432, %v428
        %436 = vrot.lane.b32.xlu0 %v379, 80
        %v437 = vpop.permute.xlu0 %436
        %438 = vrot.lane.b32.xlu0 %v383, 80
        %v439 = vpop.permute.xlu0 %438
        %440 = vrot.lane.b32.xlu0 %v387, 80
        %v441 = vpop.permute.xlu0 %440
        %v442 = vsel %vm371, %v439, %v441
        %v443 = vsel %vm371, %v437, %v439
        %v444 = vsel %vm371, %v441, %v437
        %s445 = sld [smem:[#allocation4 + $0x2]]
        %s446 = sld [smem:[#allocation4 + $0x33]]
        %v447 = vstv %s445
        %v448 = vmul.f32 %v447, %v324
        %v449 = vmul.f32 %v447, %v323
        %v450 = vmul.f32 %v447, %v322
        %v451 = vstv %s446
        %v452 = vmul.f32 %v451, %v399
        %v453 = vmul.f32 %v451, %v398
        %v454 = vmul.f32 %v451, %v397
        %v455 = vadd.f32 %v448, %v452
        %v456 = vadd.f32 %v449, %v453
        %v457 = vadd.f32 %v450, %v454
        %s458 = sld [smem:[#allocation4 + $0x9]]
        %s459 = sld [smem:[#allocation4 + $0x3a]]
        %v460 = vstv %s458
        %v461 = vmul.f32 %v460, %v334
        %v462 = vmul.f32 %v460, %v333
        %v463 = vmul.f32 %v460, %v332
        %v464 = vstv %s459
        %v465 = vmul.f32 %v464, %v408
        %v466 = vmul.f32 %v464, %v407
        %v467 = vmul.f32 %v464, %v406
        %v468 = vadd.f32 %v461, %v465
        %v469 = vadd.f32 %v462, %v466
        %v470 = vadd.f32 %v463, %v467
        %v471 = vadd.f32 %v455, %v468
        %v472 = vadd.f32 %v456, %v469
        %v473 = vadd.f32 %v457, %v470
        %s474 = sld [smem:[#allocation4 + $0x10]]
        %s475 = sld [smem:[#allocation4 + $0x41]]
        %v476 = vstv %s474
        %v477 = vmul.f32 %v476, %v344
        %v478 = vmul.f32 %v476, %v343
        %v479 = vmul.f32 %v476, %v342
        %v480 = vstv %s475
        %v481 = vmul.f32 %v480, %v417
        %v482 = vmul.f32 %v480, %v416
        %v483 = vmul.f32 %v480, %v415
        %v484 = vadd.f32 %v477, %v481
        %v485 = vadd.f32 %v478, %v482
        %v486 = vadd.f32 %v479, %v483
        %v487 = vadd.f32 %v471, %v484
        %v488 = vadd.f32 %v472, %v485
        %v489 = vadd.f32 %v473, %v486
        %s490 = sld [smem:[#allocation4 + $0x17]]
        %s491 = sld [smem:[#allocation4 + $0x48]]
        %v492 = vstv %s490
        %v493 = vmul.f32 %v492, %v293
        %v494 = vstv %s491
        %v495 = vmul.f32 %v494, %v294
        %v496 = vadd.f32 %v493, %v495
        %v498 = vlaneseq
        %v499 = vshrl.u32 %v498, 7
        %v500 = vsub.s32 0, %v499
        %v501 = vrot.slane %v496, %v500
        %v502 = vlaneseq
        %v503 = vshrl.u32 %v502, 7
        %v504 = vsub.s32 1, %v503
        %v505 = vrot.slane %v496, %v504
        %v506 = vlaneseq
        %v507 = vshrl.u32 %v506, 7
        %v508 = vsub.s32 2, %v507
        %v509 = vrot.slane %v496, %v508
        %v513 = vadd.f32 %v487, %v501
        %v514 = vadd.f32 %v488, %v505
        %v515 = vadd.f32 %v489, %v509
        %s516 = sld [smem:[#allocation4 + $0x1e]]
        %s517 = sld [smem:[#allocation4 + $0x4f]]
        %v518 = vstv %s516
        %v519 = vmul.f32 %v518, %v353
        %v520 = vmul.f32 %v518, %v352
        %v521 = vmul.f32 %v518, %v354
        %v522 = vstv %s517
        %v523 = vmul.f32 %v522, %v425
        %v524 = vmul.f32 %v522, %v424
        %v525 = vmul.f32 %v522, %v426
        %v526 = vadd.f32 %v519, %v523
        %v527 = vadd.f32 %v520, %v524
        %v528 = vadd.f32 %v521, %v525
        %v529 = vadd.f32 %v513, %v526
        %v530 = vadd.f32 %v514, %v527
        %v531 = vadd.f32 %v515, %v528
        %s532 = sld [smem:[#allocation4 + $0x25]]
        %s533 = sld [smem:[#allocation4 + $0x56]]
        %v534 = vstv %s532
        %v535 = vmul.f32 %v534, %v363
        %v536 = vmul.f32 %v534, %v362
        %v537 = vmul.f32 %v534, %v364
        %v538 = vstv %s533
        %v539 = vmul.f32 %v538, %v434
        %v540 = vmul.f32 %v538, %v433
        %v541 = vmul.f32 %v538, %v435
        %v542 = vadd.f32 %v535, %v539
        %v543 = vadd.f32 %v536, %v540
        %v544 = vadd.f32 %v537, %v541
        %v545 = vadd.f32 %v529, %v542
        %v546 = vadd.f32 %v530, %v543
        %v547 = vadd.f32 %v531, %v544
        %s548 = sld [smem:[#allocation4 + $0x2c]]
        %s549 = sld [smem:[#allocation4 + $0x5d]]
        %v550 = vstv %s548
        %v551 = vmul.f32 %v550, %v373
        %v552 = vmul.f32 %v550, %v372
        %v553 = vmul.f32 %v550, %v374
        %v554 = vstv %s549
        %v555 = vmul.f32 %v554, %v443
        %v556 = vmul.f32 %v554, %v442
        %v557 = vmul.f32 %v554, %v444
        %v558 = vadd.f32 %v551, %v555
        %v559 = vadd.f32 %v552, %v556
        %v560 = vadd.f32 %v553, %v557
        %v561 = vadd.f32 %v545, %v558
        %v562 = vadd.f32 %v546, %v559
        %v563 = vadd.f32 %v547, %v560
        %564 = vrot.lane.b32.xlu0 %v561, 3
        %v565 = vpop.permute.xlu0 %564
        %566 = vrot.lane.b32.xlu0 %v562, 3
        %v567 = vpop.permute.xlu0 %566
        %568 = vrot.lane.b32.xlu0 %v563, 3
        %v569 = vpop.permute.xlu0 %568
        %vm570 = vcmp.lt.s32.totalorder %v320, 3
        %v571 = vsel %vm570, %v565, %v567
        %v572 = vsel %vm570, %v569, %v565
        %v573 = vmul.f32 %v572, %v295
        %v574 = vmul.f32 %v571, %v296
        %s575 = sld [smem:[#allocation4 + $0x3]]
        %s576 = sld [smem:[#allocation4 + $0x34]]
        %v577 = vstv %s575
        %v578 = vmul.f32 %v577, %v324
        %v579 = vmul.f32 %v577, %v323
        %v580 = vmul.f32 %v577, %v322
        %v581 = vstv %s576
        %v582 = vmul.f32 %v581, %v399
        %v583 = vmul.f32 %v581, %v398
        %v584 = vmul.f32 %v581, %v397
        %v585 = vadd.f32 %v578, %v582
        %v586 = vadd.f32 %v579, %v583
        %v587 = vadd.f32 %v580, %v584
        %s588 = sld [smem:[#allocation4 + $0xa]]
        %s589 = sld [smem:[#allocation4 + $0x3b]]
        %v590 = vstv %s588
        %v591 = vmul.f32 %v590, %v334
        %v592 = vmul.f32 %v590, %v333
        %v593 = vmul.f32 %v590, %v332
        %v594 = vstv %s589
        %v595 = vmul.f32 %v594, %v408
        %v596 = vmul.f32 %v594, %v407
        %v597 = vmul.f32 %v594, %v406
        %v598 = vadd.f32 %v591, %v595
        %v599 = vadd.f32 %v592, %v596
        %v600 = vadd.f32 %v593, %v597
        %v601 = vadd.f32 %v585, %v598
        %v602 = vadd.f32 %v586, %v599
        %v603 = vadd.f32 %v587, %v600
        %s604 = sld [smem:[#allocation4 + $0x11]]
        %s605 = sld [smem:[#allocation4 + $0x42]]
        %v606 = vstv %s604
        %v607 = vmul.f32 %v606, %v344
        %v608 = vmul.f32 %v606, %v343
        %v609 = vmul.f32 %v606, %v342
        %v610 = vstv %s605
        %v611 = vmul.f32 %v610, %v417
        %v612 = vmul.f32 %v610, %v416
        %v613 = vmul.f32 %v610, %v415
        %v614 = vadd.f32 %v607, %v611
        %v615 = vadd.f32 %v608, %v612
        %v616 = vadd.f32 %v609, %v613
        %v617 = vadd.f32 %v601, %v614
        %v618 = vadd.f32 %v602, %v615
        %v619 = vadd.f32 %v603, %v616
        %s620 = sld [smem:[#allocation4 + $0x18]]
        %s621 = sld [smem:[#allocation4 + $0x49]]
        %v622 = vstv %s620
        %v623 = vmul.f32 %v622, %v293
        %v624 = vstv %s621
        %v625 = vmul.f32 %v624, %v294
        %v626 = vadd.f32 %v623, %v625
        %v628 = vlaneseq
        %v629 = vshrl.u32 %v628, 7
        %v630 = vsub.s32 0, %v629
        %v631 = vrot.slane %v626, %v630
        %v632 = vlaneseq
        %v633 = vshrl.u32 %v632, 7
        %v634 = vsub.s32 1, %v633
        %v635 = vrot.slane %v626, %v634
        %v636 = vlaneseq
        %v637 = vshrl.u32 %v636, 7
        %v638 = vsub.s32 2, %v637
        %v639 = vrot.slane %v626, %v638
        %v643 = vadd.f32 %v617, %v631
        %v644 = vadd.f32 %v618, %v635
        %v645 = vadd.f32 %v619, %v639
        %s646 = sld [smem:[#allocation4 + $0x1f]]
        %s647 = sld [smem:[#allocation4 + $0x50]]
        %v648 = vstv %s646
        %v649 = vmul.f32 %v648, %v353
        %v650 = vmul.f32 %v648, %v352
        %v651 = vmul.f32 %v648, %v354
        %v652 = vstv %s647
        %v653 = vmul.f32 %v652, %v425
        %v654 = vmul.f32 %v652, %v424
        %v655 = vmul.f32 %v652, %v426
        %v656 = vadd.f32 %v649, %v653
        %v657 = vadd.f32 %v650, %v654
        %v658 = vadd.f32 %v651, %v655
        %v659 = vadd.f32 %v643, %v656
        %v660 = vadd.f32 %v644, %v657
        %v661 = vadd.f32 %v645, %v658
        %s662 = sld [smem:[#allocation4 + $0x26]]
        %s663 = sld [smem:[#allocation4 + $0x57]]
        %v664 = vstv %s662
        %v665 = vmul.f32 %v664, %v363
        %v666 = vmul.f32 %v664, %v362
        %v667 = vmul.f32 %v664, %v364
        %v668 = vstv %s663
        %v669 = vmul.f32 %v668, %v434
        %v670 = vmul.f32 %v668, %v433
        %v671 = vmul.f32 %v668, %v435
        %v672 = vadd.f32 %v665, %v669
        %v673 = vadd.f32 %v666, %v670
        %v674 = vadd.f32 %v667, %v671
        %v675 = vadd.f32 %v659, %v672
        %v676 = vadd.f32 %v660, %v673
        %v677 = vadd.f32 %v661, %v674
        %s678 = sld [smem:[#allocation4 + $0x2d]]
        %s679 = sld [smem:[#allocation4 + $0x5e]]
        %v680 = vstv %s678
        %v681 = vmul.f32 %v680, %v373
        %v682 = vmul.f32 %v680, %v372
        %v683 = vmul.f32 %v680, %v374
        %v684 = vstv %s679
        %v685 = vmul.f32 %v684, %v443
        %v686 = vmul.f32 %v684, %v442
        %v687 = vmul.f32 %v684, %v444
        %v688 = vadd.f32 %v681, %v685
        %v689 = vadd.f32 %v682, %v686
        %v690 = vadd.f32 %v683, %v687
        %v691 = vadd.f32 %v675, %v688
        %v692 = vadd.f32 %v676, %v689
        %v693 = vadd.f32 %v677, %v690
        %694 = vrot.lane.b32.xlu0 %v691, 2
        %v695 = vpop.permute.xlu0 %694
        %696 = vrot.lane.b32.xlu0 %v692, 2
        %v697 = vpop.permute.xlu0 %696
        %698 = vrot.lane.b32.xlu0 %v693, 2
        %v699 = vpop.permute.xlu0 %698
        %vm700 = vcmp.lt.s32.totalorder %v320, 2
        %v701 = vsel %vm700, %v695, %v697
        %v702 = vsel %vm700, %v699, %v695
        %v705 = vrot.slane %v295, 1
        %v706 = vrot.slane %v296, 1
        %v709 = vmul.f32 %v702, %v705
        %v710 = vmul.f32 %v701, %v706
        %v711 = vadd.f32 %v573, %v709
        %v712 = vadd.f32 %v574, %v710
        %s713 = sld [smem:[#allocation4 + $0x4]]
        %s714 = sld [smem:[#allocation4 + $0x35]]
        %v715 = vstv %s713
        %v716 = vmul.f32 %v715, %v324
        %v717 = vmul.f32 %v715, %v323
        %v718 = vmul.f32 %v715, %v322
        %v719 = vstv %s714
        %v720 = vmul.f32 %v719, %v399
        %v721 = vmul.f32 %v719, %v398
        %v722 = vmul.f32 %v719, %v397
        %v723 = vadd.f32 %v716, %v720
        %v724 = vadd.f32 %v717, %v721
        %v725 = vadd.f32 %v718, %v722
        %s726 = sld [smem:[#allocation4 + $0xb]]
        %s727 = sld [smem:[#allocation4 + $0x3c]]
        %v728 = vstv %s726
        %v729 = vmul.f32 %v728, %v334
        %v730 = vmul.f32 %v728, %v333
        %v731 = vmul.f32 %v728, %v332
        %v732 = vstv %s727
        %v733 = vmul.f32 %v732, %v408
        %v734 = vmul.f32 %v732, %v407
        %v735 = vmul.f32 %v732, %v406
        %v736 = vadd.f32 %v729, %v733
        %v737 = vadd.f32 %v730, %v734
        %v738 = vadd.f32 %v731, %v735
        %v739 = vadd.f32 %v723, %v736
        %v740 = vadd.f32 %v724, %v737
        %v741 = vadd.f32 %v725, %v738
        %s742 = sld [smem:[#allocation4 + $0x12]]
        %s743 = sld [smem:[#allocation4 + $0x43]]
        %v744 = vstv %s742
        %v745 = vmul.f32 %v744, %v344
        %v746 = vmul.f32 %v744, %v343
        %v747 = vmul.f32 %v744, %v342
        %v748 = vstv %s743
        %v749 = vmul.f32 %v748, %v417
        %v750 = vmul.f32 %v748, %v416
        %v751 = vmul.f32 %v748, %v415
        %v752 = vadd.f32 %v745, %v749
        %v753 = vadd.f32 %v746, %v750
        %v754 = vadd.f32 %v747, %v751
        %v755 = vadd.f32 %v739, %v752
        %v756 = vadd.f32 %v740, %v753
        %v757 = vadd.f32 %v741, %v754
        %s758 = sld [smem:[#allocation4 + $0x19]]
        %s759 = sld [smem:[#allocation4 + $0x4a]]
        %v760 = vstv %s758
        %v761 = vmul.f32 %v760, %v293
        %v762 = vstv %s759
        %v763 = vmul.f32 %v762, %v294
        %v764 = vadd.f32 %v761, %v763
        %v766 = vlaneseq
        %v767 = vshrl.u32 %v766, 7
        %v768 = vsub.s32 0, %v767
        %v769 = vrot.slane %v764, %v768
        %v770 = vlaneseq
        %v771 = vshrl.u32 %v770, 7
        %v772 = vsub.s32 1, %v771
        %v773 = vrot.slane %v764, %v772
        %v774 = vlaneseq
        %v775 = vshrl.u32 %v774, 7
        %v776 = vsub.s32 2, %v775
        %v777 = vrot.slane %v764, %v776
        %v781 = vadd.f32 %v755, %v769
        %v782 = vadd.f32 %v756, %v773
        %v783 = vadd.f32 %v757, %v777
        %s784 = sld [smem:[#allocation4 + $0x20]]
        %s785 = sld [smem:[#allocation4 + $0x51]]
        %v786 = vstv %s784
        %v787 = vmul.f32 %v786, %v353
        %v788 = vmul.f32 %v786, %v352
        %v789 = vmul.f32 %v786, %v354
        %v790 = vstv %s785
        %v791 = vmul.f32 %v790, %v425
        %v792 = vmul.f32 %v790, %v424
        %v793 = vmul.f32 %v790, %v426
        %v794 = vadd.f32 %v787, %v791
        %v795 = vadd.f32 %v788, %v792
        %v796 = vadd.f32 %v789, %v793
        %v797 = vadd.f32 %v781, %v794
        %v798 = vadd.f32 %v782, %v795
        %v799 = vadd.f32 %v783, %v796
        %s800 = sld [smem:[#allocation4 + $0x27]]
        %s801 = sld [smem:[#allocation4 + $0x58]]
        %v802 = vstv %s800
        %v803 = vmul.f32 %v802, %v363
        %v804 = vmul.f32 %v802, %v362
        %v805 = vmul.f32 %v802, %v364
        %v806 = vstv %s801
        %v807 = vmul.f32 %v806, %v434
        %v808 = vmul.f32 %v806, %v433
        %v809 = vmul.f32 %v806, %v435
        %v810 = vadd.f32 %v803, %v807
        %v811 = vadd.f32 %v804, %v808
        %v812 = vadd.f32 %v805, %v809
        %v813 = vadd.f32 %v797, %v810
        %v814 = vadd.f32 %v798, %v811
        %v815 = vadd.f32 %v799, %v812
        %s816 = sld [smem:[#allocation4 + $0x2e]]
        %s817 = sld [smem:[#allocation4 + $0x5f]]
        %v818 = vstv %s816
        %v819 = vmul.f32 %v818, %v373
        %v820 = vmul.f32 %v818, %v372
        %v821 = vmul.f32 %v818, %v374
        %v822 = vstv %s817
        %v823 = vmul.f32 %v822, %v443
        %v824 = vmul.f32 %v822, %v442
        %v825 = vmul.f32 %v822, %v444
        %v826 = vadd.f32 %v819, %v823
        %v827 = vadd.f32 %v820, %v824
        %v828 = vadd.f32 %v821, %v825
        %v829 = vadd.f32 %v813, %v826
        %v830 = vadd.f32 %v814, %v827
        %v831 = vadd.f32 %v815, %v828
        %832 = vrot.lane.b32.xlu0 %v829, 1
        %v833 = vpop.permute.xlu0 %832
        %834 = vrot.lane.b32.xlu0 %v830, 1
        %v835 = vpop.permute.xlu0 %834
        %836 = vrot.lane.b32.xlu0 %v831, 1
        %v837 = vpop.permute.xlu0 %836
        %vm838 = vcmp.lt.s32.totalorder %v320, 1
        %v839 = vsel %vm838, %v833, %v835
        %v840 = vsel %vm838, %v837, %v833
        %v841 = vrot.slane %v295, 2
        %v842 = vrot.slane %v296, 2
        %v845 = vmul.f32 %v840, %v841
        %v846 = vmul.f32 %v839, %v842
        %v847 = vadd.f32 %v711, %v845
        %v848 = vadd.f32 %v712, %v846
        %s849 = sld [smem:[#allocation4 + $0x5]]
        %s850 = sld [smem:[#allocation4 + $0x36]]
        %v851 = vstv %s849
        %v852 = vmul.f32 %v851, %v324
        %v853 = vmul.f32 %v851, %v323
        %v854 = vstv %s850
        %v855 = vmul.f32 %v854, %v399
        %v856 = vmul.f32 %v854, %v398
        %v857 = vadd.f32 %v852, %v855
        %v858 = vadd.f32 %v853, %v856
        %s859 = sld [smem:[#allocation4 + $0xc]]
        %s860 = sld [smem:[#allocation4 + $0x3d]]
        %v861 = vstv %s859
        %v862 = vmul.f32 %v861, %v334
        %v863 = vmul.f32 %v861, %v333
        %v864 = vstv %s860
        %v865 = vmul.f32 %v864, %v408
        %v866 = vmul.f32 %v864, %v407
        %v867 = vadd.f32 %v862, %v865
        %v868 = vadd.f32 %v863, %v866
        %v869 = vadd.f32 %v857, %v867
        %v870 = vadd.f32 %v858, %v868
        %s871 = sld [smem:[#allocation4 + $0x13]]
        %s872 = sld [smem:[#allocation4 + $0x44]]
        %v873 = vstv %s871
        %v874 = vmul.f32 %v873, %v344
        %v875 = vmul.f32 %v873, %v343
        %v876 = vstv %s872
        %v877 = vmul.f32 %v876, %v417
        %v878 = vmul.f32 %v876, %v416
        %v879 = vadd.f32 %v874, %v877
        %v880 = vadd.f32 %v875, %v878
        %v881 = vadd.f32 %v869, %v879
        %v882 = vadd.f32 %v870, %v880
        %s883 = sld [smem:[#allocation4 + $0x1a]]
        %s884 = sld [smem:[#allocation4 + $0x4b]]
        %v885 = vstv %s883
        %v886 = vmul.f32 %v885, %v293
        %v887 = vstv %s884
        %v888 = vmul.f32 %v887, %v294
        %v889 = vadd.f32 %v886, %v888
        %v891 = vlaneseq
        %v892 = vshrl.u32 %v891, 7
        %v893 = vsub.s32 0, %v892
        %v894 = vrot.slane %v889, %v893
        %v895 = vlaneseq
        %v896 = vshrl.u32 %v895, 7
        %v897 = vsub.s32 1, %v896
        %v898 = vrot.slane %v889, %v897
        %v901 = vadd.f32 %v881, %v894
        %v902 = vadd.f32 %v882, %v898
        %s903 = sld [smem:[#allocation4 + $0x21]]
        %s904 = sld [smem:[#allocation4 + $0x52]]
        %v905 = vstv %s903
        %v906 = vmul.f32 %v905, %v353
        %v907 = vmul.f32 %v905, %v352
        %v908 = vstv %s904
        %v909 = vmul.f32 %v908, %v425
        %v910 = vmul.f32 %v908, %v424
        %v911 = vadd.f32 %v906, %v909
        %v912 = vadd.f32 %v907, %v910
        %v913 = vadd.f32 %v901, %v911
        %v914 = vadd.f32 %v902, %v912
        %s915 = sld [smem:[#allocation4 + $0x28]]
        %s916 = sld [smem:[#allocation4 + $0x59]]
        %v917 = vstv %s915
        %v918 = vmul.f32 %v917, %v363
        %v919 = vmul.f32 %v917, %v362
        %v920 = vstv %s916
        %v921 = vmul.f32 %v920, %v434
        %v922 = vmul.f32 %v920, %v433
        %v923 = vadd.f32 %v918, %v921
        %v924 = vadd.f32 %v919, %v922
        %v925 = vadd.f32 %v913, %v923
        %v926 = vadd.f32 %v914, %v924
        %s927 = sld [smem:[#allocation4 + $0x2f]]
        %s928 = sld [smem:[#allocation4 + $0x60]]
        %v929 = vstv %s927
        %v930 = vmul.f32 %v929, %v373
        %v931 = vmul.f32 %v929, %v372
        %v932 = vstv %s928
        %v933 = vmul.f32 %v932, %v443
        %v934 = vmul.f32 %v932, %v442
        %v935 = vadd.f32 %v930, %v933
        %v936 = vadd.f32 %v931, %v934
        %v937 = vadd.f32 %v925, %v935
        %v938 = vadd.f32 %v926, %v936
        %v939 = vadd.f32 %v847, %v937
        %v940 = vadd.f32 %v848, %v938
        %s941 = sld [smem:[#allocation4 + $0x6]]
        %s942 = sld [smem:[#allocation4 + $0x37]]
        %v943 = vstv %s941
        %v944 = vmul.f32 %v943, %v324
        %v945 = vmul.f32 %v943, %v323
        %v946 = vmul.f32 %v943, %v322
        %v947 = vstv %s942
        %v948 = vmul.f32 %v947, %v399
        %v949 = vmul.f32 %v947, %v398
        %v950 = vmul.f32 %v947, %v397
        %v951 = vadd.f32 %v944, %v948
        %v952 = vadd.f32 %v945, %v949
        %v953 = vadd.f32 %v946, %v950
        %s954 = sld [smem:[#allocation4 + $0xd]]
        %s955 = sld [smem:[#allocation4 + $0x3e]]
        %v956 = vstv %s954
        %v957 = vmul.f32 %v956, %v334
        %v958 = vmul.f32 %v956, %v333
        %v959 = vmul.f32 %v956, %v332
        %v960 = vstv %s955
        %v961 = vmul.f32 %v960, %v408
        %v962 = vmul.f32 %v960, %v407
        %v963 = vmul.f32 %v960, %v406
        %v964 = vadd.f32 %v957, %v961
        %v965 = vadd.f32 %v958, %v962
        %v966 = vadd.f32 %v959, %v963
        %v967 = vadd.f32 %v951, %v964
        %v968 = vadd.f32 %v952, %v965
        %v969 = vadd.f32 %v953, %v966
        %s970 = sld [smem:[#allocation4 + $0x14]]
        %s971 = sld [smem:[#allocation4 + $0x45]]
        %v972 = vstv %s970
        %v973 = vmul.f32 %v972, %v344
        %v974 = vmul.f32 %v972, %v343
        %v975 = vmul.f32 %v972, %v342
        %v976 = vstv %s971
        %v977 = vmul.f32 %v976, %v417
        %v978 = vmul.f32 %v976, %v416
        %v979 = vmul.f32 %v976, %v415
        %v980 = vadd.f32 %v973, %v977
        %v981 = vadd.f32 %v974, %v978
        %v982 = vadd.f32 %v975, %v979
        %v983 = vadd.f32 %v967, %v980
        %v984 = vadd.f32 %v968, %v981
        %v985 = vadd.f32 %v969, %v982
        %s986 = sld [smem:[#allocation4 + $0x1b]]
        %s987 = sld [smem:[#allocation4 + $0x4c]]
        %v988 = vstv %s986
        %v989 = vmul.f32 %v988, %v293
        %v990 = vstv %s987
        %v991 = vmul.f32 %v990, %v294
        %v992 = vadd.f32 %v989, %v991
        %v994 = vlaneseq
        %v995 = vshrl.u32 %v994, 7
        %v996 = vsub.s32 0, %v995
        %v997 = vrot.slane %v992, %v996
        %v998 = vlaneseq
        %v999 = vshrl.u32 %v998, 7
        %v1000 = vsub.s32 1, %v999
        %v1001 = vrot.slane %v992, %v1000
        %v1002 = vlaneseq
        %v1003 = vshrl.u32 %v1002, 7
        %v1004 = vsub.s32 2, %v1003
        %v1005 = vrot.slane %v992, %v1004
        %v1009 = vadd.f32 %v983, %v997
        %v1010 = vadd.f32 %v984, %v1001
        %v1011 = vadd.f32 %v985, %v1005
        %s1012 = sld [smem:[#allocation4 + $0x22]]
        %s1013 = sld [smem:[#allocation4 + $0x53]]
        %v1014 = vstv %s1012
        %v1015 = vmul.f32 %v1014, %v353
        %v1016 = vmul.f32 %v1014, %v352
        %v1017 = vmul.f32 %v1014, %v354
        %v1018 = vstv %s1013
        %v1019 = vmul.f32 %v1018, %v425
        %v1020 = vmul.f32 %v1018, %v424
        %v1021 = vmul.f32 %v1018, %v426
        %v1022 = vadd.f32 %v1015, %v1019
        %v1023 = vadd.f32 %v1016, %v1020
        %v1024 = vadd.f32 %v1017, %v1021
        %v1025 = vadd.f32 %v1009, %v1022
        %v1026 = vadd.f32 %v1010, %v1023
        %v1027 = vadd.f32 %v1011, %v1024
        %s1028 = sld [smem:[#allocation4 + $0x29]]
        %s1029 = sld [smem:[#allocation4 + $0x5a]]
        %v1030 = vstv %s1028
        %v1031 = vmul.f32 %v1030, %v363
        %v1032 = vmul.f32 %v1030, %v362
        %v1033 = vmul.f32 %v1030, %v364
        %v1034 = vstv %s1029
        %v1035 = vmul.f32 %v1034, %v434
        %v1036 = vmul.f32 %v1034, %v433
        %v1037 = vmul.f32 %v1034, %v435
        %v1038 = vadd.f32 %v1031, %v1035
        %v1039 = vadd.f32 %v1032, %v1036
        %v1040 = vadd.f32 %v1033, %v1037
        %v1041 = vadd.f32 %v1025, %v1038
        %v1042 = vadd.f32 %v1026, %v1039
        %v1043 = vadd.f32 %v1027, %v1040
        %s1044 = sld [smem:[#allocation4 + $0x30]]
        %s1045 = sld [smem:[#allocation4 + $0x61]]
        %v1046 = vstv %s1044
        %v1047 = vmul.f32 %v1046, %v373
        %v1048 = vmul.f32 %v1046, %v372
        %v1049 = vmul.f32 %v1046, %v374
        %v1050 = vstv %s1045
        %v1051 = vmul.f32 %v1050, %v443
        %v1052 = vmul.f32 %v1050, %v442
        %v1053 = vmul.f32 %v1050, %v444
        %v1054 = vadd.f32 %v1047, %v1051
        %v1055 = vadd.f32 %v1048, %v1052
        %v1056 = vadd.f32 %v1049, %v1053
        %v1057 = vadd.f32 %v1041, %v1054
        %v1058 = vadd.f32 %v1042, %v1055
        %v1059 = vadd.f32 %v1043, %v1056
        %1060 = vrot.lane.b32.xlu0 %v1057, 127
        %v1061 = vpop.permute.xlu0 %1060
        %1062 = vrot.lane.b32.xlu0 %v1058, 127
        %v1063 = vpop.permute.xlu0 %1062
        %1064 = vrot.lane.b32.xlu0 %v1059, 127
        %v1065 = vpop.permute.xlu0 %1064
        %vm1066 = vcmp.lt.s32.totalorder %v320, 127
        %v1067 = vsel %vm1066, %v1063, %v1065
        %v1068 = vsel %vm1066, %v1061, %v1063
        %v1069 = vrot.slane %v295, 4
        %v1070 = vrot.slane %v296, 4
        %v1073 = vmul.f32 %v1068, %v1069
        %v1074 = vmul.f32 %v1067, %v1070
        %v1075 = vadd.f32 %v939, %v1073
        %v1076 = vadd.f32 %v940, %v1074
        %s1077 = sld [smem:[#allocation4 + $0x7]]
        %s1078 = sld [smem:[#allocation4 + $0x38]]
        %v1079 = vstv %s1077
        %v1080 = vmul.f32 %v1079, %v324
        %v1081 = vmul.f32 %v1079, %v323
        %v1082 = vmul.f32 %v1079, %v322
        %v1083 = vstv %s1078
        %v1084 = vmul.f32 %v1083, %v399
        %v1085 = vmul.f32 %v1083, %v398
        %v1086 = vmul.f32 %v1083, %v397
        %v1087 = vadd.f32 %v1080, %v1084
        %v1088 = vadd.f32 %v1081, %v1085
        %v1089 = vadd.f32 %v1082, %v1086
        %s1090 = sld [smem:[#allocation4 + $0xe]]
        %s1091 = sld [smem:[#allocation4 + $0x3f]]
        %v1092 = vstv %s1090
        %v1093 = vmul.f32 %v1092, %v334
        %v1094 = vmul.f32 %v1092, %v333
        %v1095 = vmul.f32 %v1092, %v332
        %v1096 = vstv %s1091
        %v1097 = vmul.f32 %v1096, %v408
        %v1098 = vmul.f32 %v1096, %v407
        %v1099 = vmul.f32 %v1096, %v406
        %v1100 = vadd.f32 %v1093, %v1097
        %v1101 = vadd.f32 %v1094, %v1098
        %v1102 = vadd.f32 %v1095, %v1099
        %v1103 = vadd.f32 %v1087, %v1100
        %v1104 = vadd.f32 %v1088, %v1101
        %v1105 = vadd.f32 %v1089, %v1102
        %s1106 = sld [smem:[#allocation4 + $0x15]]
        %s1107 = sld [smem:[#allocation4 + $0x46]]
        %v1108 = vstv %s1106
        %v1109 = vmul.f32 %v1108, %v344
        %v1110 = vmul.f32 %v1108, %v343
        %v1111 = vmul.f32 %v1108, %v342
        %v1112 = vstv %s1107
        %v1113 = vmul.f32 %v1112, %v417
        %v1114 = vmul.f32 %v1112, %v416
        %v1115 = vmul.f32 %v1112, %v415
        %v1116 = vadd.f32 %v1109, %v1113
        %v1117 = vadd.f32 %v1110, %v1114
        %v1118 = vadd.f32 %v1111, %v1115
        %v1119 = vadd.f32 %v1103, %v1116
        %v1120 = vadd.f32 %v1104, %v1117
        %v1121 = vadd.f32 %v1105, %v1118
        %s1122 = sld [smem:[#allocation4 + $0x1c]]
        %s1123 = sld [smem:[#allocation4 + $0x4d]]
        %v1124 = vstv %s1122
        %v1125 = vmul.f32 %v1124, %v293
        %v1126 = vstv %s1123
        %v1127 = vmul.f32 %v1126, %v294
        %v1128 = vadd.f32 %v1125, %v1127
        %v1130 = vlaneseq
        %v1131 = vshrl.u32 %v1130, 7
        %v1132 = vsub.s32 0, %v1131
        %v1133 = vrot.slane %v1128, %v1132
        %v1134 = vlaneseq
        %v1135 = vshrl.u32 %v1134, 7
        %v1136 = vsub.s32 1, %v1135
        %v1137 = vrot.slane %v1128, %v1136
        %v1138 = vlaneseq
        %v1139 = vshrl.u32 %v1138, 7
        %v1140 = vsub.s32 2, %v1139
        %v1141 = vrot.slane %v1128, %v1140
        %v1145 = vadd.f32 %v1119, %v1133
        %v1146 = vadd.f32 %v1120, %v1137
        %v1147 = vadd.f32 %v1121, %v1141
        %s1148 = sld [smem:[#allocation4 + $0x23]]
        %s1149 = sld [smem:[#allocation4 + $0x54]]
        %v1150 = vstv %s1148
        %v1151 = vmul.f32 %v1150, %v353
        %v1152 = vmul.f32 %v1150, %v352
        %v1153 = vmul.f32 %v1150, %v354
        %v1154 = vstv %s1149
        %v1155 = vmul.f32 %v1154, %v425
        %v1156 = vmul.f32 %v1154, %v424
        %v1157 = vmul.f32 %v1154, %v426
        %v1158 = vadd.f32 %v1151, %v1155
        %v1159 = vadd.f32 %v1152, %v1156
        %v1160 = vadd.f32 %v1153, %v1157
        %v1161 = vadd.f32 %v1145, %v1158
        %v1162 = vadd.f32 %v1146, %v1159
        %v1163 = vadd.f32 %v1147, %v1160
        %s1164 = sld [smem:[#allocation4 + $0x2a]]
        %s1165 = sld [smem:[#allocation4 + $0x5b]]
        %v1166 = vstv %s1164
        %v1167 = vmul.f32 %v1166, %v363
        %v1168 = vmul.f32 %v1166, %v362
        %v1169 = vmul.f32 %v1166, %v364
        %v1170 = vstv %s1165
        %v1171 = vmul.f32 %v1170, %v434
        %v1172 = vmul.f32 %v1170, %v433
        %v1173 = vmul.f32 %v1170, %v435
        %v1174 = vadd.f32 %v1167, %v1171
        %v1175 = vadd.f32 %v1168, %v1172
        %v1176 = vadd.f32 %v1169, %v1173
        %v1177 = vadd.f32 %v1161, %v1174
        %v1178 = vadd.f32 %v1162, %v1175
        %v1179 = vadd.f32 %v1163, %v1176
        %s1180 = sld [smem:[#allocation4 + $0x31]]
        %s1181 = sld [smem:[#allocation4 + $0x62]]
        %v1182 = vstv %s1180
        %v1183 = vmul.f32 %v1182, %v373
        %v1184 = vmul.f32 %v1182, %v372
        %v1185 = vmul.f32 %v1182, %v374
        %v1186 = vstv %s1181
        %v1187 = vmul.f32 %v1186, %v443
        %v1188 = vmul.f32 %v1186, %v442
        %v1189 = vmul.f32 %v1186, %v444
        %v1190 = vadd.f32 %v1183, %v1187
        %v1191 = vadd.f32 %v1184, %v1188
        %v1192 = vadd.f32 %v1185, %v1189
        %v1193 = vadd.f32 %v1177, %v1190
        %v1194 = vadd.f32 %v1178, %v1191
        %v1195 = vadd.f32 %v1179, %v1192
        %1196 = vrot.lane.b32.xlu0 %v1193, 126
        %v1197 = vpop.permute.xlu0 %1196
        %1198 = vrot.lane.b32.xlu0 %v1194, 126
        %v1199 = vpop.permute.xlu0 %1198
        %1200 = vrot.lane.b32.xlu0 %v1195, 126
        %v1201 = vpop.permute.xlu0 %1200
        %vm1202 = vcmp.lt.s32.totalorder %v320, 126
        %v1203 = vsel %vm1202, %v1199, %v1201
        %v1204 = vsel %vm1202, %v1197, %v1199
        %v1205 = vrot.slane %v295, 5
        %v1206 = vrot.slane %v296, 5
        %v1209 = vmul.f32 %v1204, %v1205
        %v1210 = vmul.f32 %v1203, %v1206
        %v1211 = vadd.f32 %v1075, %v1209
        %v1212 = vadd.f32 %v1076, %v1210
        %s1213 = sld [smem:[#allocation4 + $0x8]]
        %s1214 = sld [smem:[#allocation4 + $0x39]]
        %v1215 = vstv %s1213
        %v1216 = vmul.f32 %v1215, %v324
        %v1217 = vmul.f32 %v1215, %v323
        %v1218 = vmul.f32 %v1215, %v322
        %v1219 = vstv %s1214
        %v1220 = vmul.f32 %v1219, %v399
        %v1221 = vmul.f32 %v1219, %v398
        %v1222 = vmul.f32 %v1219, %v397
        %v1223 = vadd.f32 %v1216, %v1220
        %v1224 = vadd.f32 %v1217, %v1221
        %v1225 = vadd.f32 %v1218, %v1222
        %s1226 = sld [smem:[#allocation4 + $0xf]]
        %s1227 = sld [smem:[#allocation4 + $0x40]]
        %v1228 = vstv %s1226
        %v1229 = vmul.f32 %v1228, %v334
        %v1230 = vmul.f32 %v1228, %v333
        %v1231 = vmul.f32 %v1228, %v332
        %v1232 = vstv %s1227
        %v1233 = vmul.f32 %v1232, %v408
        %v1234 = vmul.f32 %v1232, %v407
        %v1235 = vmul.f32 %v1232, %v406
        %v1236 = vadd.f32 %v1229, %v1233
        %v1237 = vadd.f32 %v1230, %v1234
        %v1238 = vadd.f32 %v1231, %v1235
        %v1239 = vadd.f32 %v1223, %v1236
        %v1240 = vadd.f32 %v1224, %v1237
        %v1241 = vadd.f32 %v1225, %v1238
        %s1242 = sld [smem:[#allocation4 + $0x16]]
        %s1243 = sld [smem:[#allocation4 + $0x47]]
        %v1244 = vstv %s1242
        %v1245 = vmul.f32 %v1244, %v344
        %v1246 = vmul.f32 %v1244, %v343
        %v1247 = vmul.f32 %v1244, %v342
        %v1248 = vstv %s1243
        %v1249 = vmul.f32 %v1248, %v417
        %v1250 = vmul.f32 %v1248, %v416
        %v1251 = vmul.f32 %v1248, %v415
        %v1252 = vadd.f32 %v1245, %v1249
        %v1253 = vadd.f32 %v1246, %v1250
        %v1254 = vadd.f32 %v1247, %v1251
        %v1255 = vadd.f32 %v1239, %v1252
        %v1256 = vadd.f32 %v1240, %v1253
        %v1257 = vadd.f32 %v1241, %v1254
        %s1258 = sld [smem:[#allocation4 + $0x1d]]
        %s1259 = sld [smem:[#allocation4 + $0x4e]]
        %v1260 = vstv %s1258
        %v1261 = vmul.f32 %v1260, %v293
        %v1262 = vstv %s1259
        %v1263 = vmul.f32 %v1262, %v294
        %v1264 = vadd.f32 %v1261, %v1263
        %v1266 = vlaneseq
        %v1267 = vshrl.u32 %v1266, 7
        %v1268 = vsub.s32 0, %v1267
        %v1269 = vrot.slane %v1264, %v1268
        %v1270 = vlaneseq
        %v1271 = vshrl.u32 %v1270, 7
        %v1272 = vsub.s32 1, %v1271
        %v1273 = vrot.slane %v1264, %v1272
        %v1274 = vlaneseq
        %v1275 = vshrl.u32 %v1274, 7
        %v1276 = vsub.s32 2, %v1275
        %v1277 = vrot.slane %v1264, %v1276
        %v1281 = vadd.f32 %v1255, %v1269
        %v1282 = vadd.f32 %v1256, %v1273
        %v1283 = vadd.f32 %v1257, %v1277
        %s1284 = sld [smem:[#allocation4 + $0x24]]
        %s1285 = sld [smem:[#allocation4 + $0x55]]
        %v1286 = vstv %s1284
        %v1287 = vmul.f32 %v1286, %v353
        %v1288 = vmul.f32 %v1286, %v352
        %v1289 = vmul.f32 %v1286, %v354
        %v1290 = vstv %s1285
        %v1291 = vmul.f32 %v1290, %v425
        %v1292 = vmul.f32 %v1290, %v424
        %v1293 = vmul.f32 %v1290, %v426
        %v1294 = vadd.f32 %v1287, %v1291
        %v1295 = vadd.f32 %v1288, %v1292
        %v1296 = vadd.f32 %v1289, %v1293
        %v1297 = vadd.f32 %v1281, %v1294
        %v1298 = vadd.f32 %v1282, %v1295
        %v1299 = vadd.f32 %v1283, %v1296
        %s1300 = sld [smem:[#allocation4 + $0x2b]]
        %s1301 = sld [smem:[#allocation4 + $0x5c]]
        %v1302 = vstv %s1300
        %v1303 = vmul.f32 %v1302, %v363
        %v1304 = vmul.f32 %v1302, %v362
        %v1305 = vmul.f32 %v1302, %v364
        %v1306 = vstv %s1301
        %v1307 = vmul.f32 %v1306, %v434
        %v1308 = vmul.f32 %v1306, %v433
        %v1309 = vmul.f32 %v1306, %v435
        %v1310 = vadd.f32 %v1303, %v1307
        %v1311 = vadd.f32 %v1304, %v1308
        %v1312 = vadd.f32 %v1305, %v1309
        %v1313 = vadd.f32 %v1297, %v1310
        %v1314 = vadd.f32 %v1298, %v1311
        %v1315 = vadd.f32 %v1299, %v1312
        %s1316 = sld [smem:[#allocation4 + $0x32]]
        %s1317 = sld [smem:[#allocation4 + $0x63]]
        %v1318 = vstv %s1316
        %v1319 = vmul.f32 %v1318, %v373
        %v1320 = vmul.f32 %v1318, %v372
        %v1321 = vmul.f32 %v1318, %v374
        %v1322 = vstv %s1317
        %v1323 = vmul.f32 %v1322, %v443
        %v1324 = vmul.f32 %v1322, %v442
        %v1325 = vmul.f32 %v1322, %v444
        %v1326 = vadd.f32 %v1319, %v1323
        %v1327 = vadd.f32 %v1320, %v1324
        %v1328 = vadd.f32 %v1321, %v1325
        %v1329 = vadd.f32 %v1313, %v1326
        %v1330 = vadd.f32 %v1314, %v1327
        %v1331 = vadd.f32 %v1315, %v1328
        %1332 = vrot.lane.b32.xlu0 %v1329, 125
        %v1333 = vpop.permute.xlu0 %1332
        %1334 = vrot.lane.b32.xlu0 %v1330, 125
        %v1335 = vpop.permute.xlu0 %1334
        %1336 = vrot.lane.b32.xlu0 %v1331, 125
        %v1337 = vpop.permute.xlu0 %1336
        %vm1338 = vcmp.lt.s32.totalorder %v320, 125
        %v1339 = vsel %vm1338, %v1335, %v1337
        %v1340 = vsel %vm1338, %v1333, %v1335
        %v1341 = vrot.slane %v295, 6
        %v1342 = vrot.slane %v296, 6
        %v1345 = vmul.f32 %v1340, %v1341
        %v1346 = vmul.f32 %v1339, %v1342
        %v1347 = vadd.f32 %v1211, %v1345
        %v1348 = vadd.f32 %v1212, %v1346
        %s1349 = sld [smem:[#allocation4]]
        %v1350 = vstv %s1349
        %v1351 = vmul.f32 %v1347, %v1350
        %v1352 = vmul.f32 %v1348, %v1350
        %s1353 = sld [smem:[#allocation4 + $0x1]]
        %v1354 = vstv %s1353
        %v1355 = vadd.f32 %v1351, %v1354
        %v1356 = vadd.f32 %v1352, %v1354
        %v1357 = vxor.u32 %v1355, 2147483648
        %v1358 = vxor.u32 %v1356, 2147483648
        %v1359 = vmul.f32 %v1357, 1.442695
        %v1360 = vpow.pop %v1359
        %v1361 = vmul.f32 %v1358, 1.442695
        %v1362 = vpow.pop %v1361
        %v1363 = vadd.f32 %v1360, 1.0
        %v1364 = vadd.f32 %v1362, 1.0
        %v1365 = vrcp.pop %v1363
        %v1366 = vmul.f32 1.0, %v1365
        %v1367 = vrcp.pop %v1364
        %v1368 = vmul.f32 1.0, %v1367
        %v1369 = vld [vmem:[%s188] sm:$0xff]
        %v1370 = vlaneseq
        %v1371 = vshrl.u32 %v1370, 7
        %v1372 = vsub.s32 0, %v1371
        %v1373 = vrot.slane %v1366, %v1372
        %v1374 = vlaneseq
        %v1375 = vshrl.u32 %v1374, 7
        %v1376 = vsub.s32 0, %v1375
        %v1377 = vrot.slane %v1368, %v1376
        %v1380 = vcombine.low %v1373, %v1377
        %v1382 = vmul.f32 %v1369, %v1380
        %1383 = vst [vmem:[%s211] sm:$0xff] %v1382
        %s1384 = sand.u32 %s98, 1
        %s1385 = scalar_lea.sflag [#allocation6], %s1384
        %s1386 = sand.u32 %s98, 1
        %s1387 = smul.addr %s1386, 8
        %s1388 = scalar_lea.vmem [#allocation11], %s1387
        // Predicated region
        $region45: #{tpu_custom_call.1} parent=31 // pred_check
          %p1389 = pneg %p108
        $region46: #{tpu_custom_call.1} parent=31 // pred_check_branch
          %1391 = sbr.rel (%p1389) target = $region48
        $region47: #{tpu_custom_call.1} parent=31 // pred_region
          %s1393 = ssub.s32 128, 128
          %1394 = vsyncadd %s1385, %s1393
          %s1395 = smul.addr %s22, 2
          %s1396 = smul.addr %s1395, 64
          %s1397 = scalar_lea.hbm %s3, %s1396
          %s1399 = sshll.u32 %s1388, 4
          %s1400 = int_to_ptr.vmem [resolvable:$true] %s1399
          %1402 = dma.vmem_to_hbm [thread:$0]  %s1400, 128, %s1397, %s1385
        $region48: #{tpu_custom_call.1} parent=31 // pred_fallthru
          _
      $region32: #{tpu_custom_call.1} parent=5 // pred_fallthru
        _
      %p1403 = scmp.le.s32.totalorder 2, %s17
      // Predicated region
      $region49: #{tpu_custom_call.1} parent=5 // pred_check
        %p1404 = pneg %p1403
      $region50: #{tpu_custom_call.1} parent=5 // pred_check_branch
        %1406 = sbr.rel (%p1404) target = $region52
      $region51: #{tpu_custom_call.1} parent=5 // pred_region
        %s1407 = ssub.s32 %s17, 2
        // Predicated region
        $region53: #{tpu_custom_call.1} parent=51 // pred_check
          %p1408 = pneg %p114
        $region54: #{tpu_custom_call.1} parent=51 // pred_check_branch
          %1410 = sbr.rel (%p1408) target = $region56
        $region55: #{tpu_custom_call.1} parent=51 // pred_region
          %s1411 = sand.u32 %s99, 1
          %s1412 = scalar_lea.sflag [#allocation6], %s1411
          %s1413 = sand.u32 %s99, 1
          %s1414 = smul.addr %s1413, 8
          %s1415 = scalar_lea.vmem [#allocation11], %s1414
          %1416 = dma.done %s1412, 128
        $region56: #{tpu_custom_call.1} parent=51 // pred_fallthru
          _
      $region52: #{tpu_custom_call.1} parent=5 // pred_fallthru
        _
    $region6: #{tpu_custom_call.1} parent=1 // loop_footer
      %s21 = sadd.s32 1, %s17
    $region7: #{tpu_custom_call.1} parent=1 // loop_footer_branch
      %16 = sbr.rel target = $region3
    $region8: #{tpu_custom_call.1} parent=1 // loop_exit
      _
    %1417 = vsyncpa [#allocation5], 1
    %s1418 = scalar_lea.sflag [#allocation5], 1
    %1419 = vsyncpa %s1418, 1
    %1420 = vsyncpa [#allocation10], 1
    %s1421 = scalar_lea.sflag [#allocation10], 1
    %1422 = vsyncpa %s1421, 1
    %1423 = vsyncpa [#allocation6], 1
    %s1424 = scalar_lea.sflag [#allocation6], 1
    %1425 = vsyncpa %s1424, 1
    %1426 = vsyncpa [#allocation7], 1
    %s1427 = scalar_lea.sflag [#allocation7], 1
    %1428 = vsyncpa %s1427, 1

</llo_original>
